<compile_context>
chip_gen: v7x
topology: tpu7x:2x2x1
jax: 0.10.0
libtpu: 0.0.40
codegen_flags: <defaults>
</compile_context>

<pallas_src>
import jax
import jax.numpy as jnp
from jax import lax
from jax.experimental import pallas as pl
from jax.experimental.pallas import tpu as pltpu


# ----------------------------------------------------------------------------
# Fused kernel: conv1 -> conv2(SN) -> ReLU -> conv3 -> (+x) -> ReLU
# ----------------------------------------------------------------------------
def _residual_block_kernel(x_ref, shifts_ref, bands_ref, bias_ref, o_ref):
    # x_ref:      (1, H, W*C)      X[0, h, w*C + c] = x[c, h, w]  (lane-dense rows)
    # shifts_ref: (2, H, H)        [0] selects row h-1, [1] selects row h+1 (zero fill)
    # bands_ref:  (3, 3, W*C, W*C) [conv_idx, kh] banded weight matrices
    # bias_ref:   (3, 1, W*C)      per-conv bias rows (bias[co] tiled over w)
    # o_ref:      (1, H, W*C)
    f32 = jnp.float32
    x = x_ref[0].astype(f32)                 # (H, W*C)
    s_dn = shifts_ref[0].astype(f32)         # (H, H)
    s_up = shifts_ref[1].astype(f32)

    def conv3x3(inp, ci):
        # 3x3 "same" conv: one banded matmul per kernel row kh, then +/-1 row
        # shift (zero-padded in H) and bias add.
        y0 = jnp.dot(inp, bands_ref[ci, 0], preferred_element_type=f32)
        y1 = jnp.dot(inp, bands_ref[ci, 1], preferred_element_type=f32)
        y2 = jnp.dot(inp, bands_ref[ci, 2], preferred_element_type=f32)
        y = (jnp.dot(s_dn, y0, preferred_element_type=f32)
             + y1
             + jnp.dot(s_up, y2, preferred_element_type=f32))
        return y + bias_ref[ci]              # (1, W*C) broadcast over rows

    r = conv3x3(x, 0)                        # conv1
    r = conv3x3(r, 1)                        # conv2 (spectral-normed weight)
    r = jnp.maximum(r, 0.0)                  # ReLU
    r = conv3x3(r, 2)                        # conv3
    out = jnp.maximum(x + r, 0.0)            # residual add + final ReLU
    o_ref[...] = out[None].astype(o_ref.dtype)


def residual_block_pallas(x_nchw, bands, bias_rows, shifts):
    """Fused ResidualBlock forward.  Input/output NCHW (PyTorch convention)."""
    N, C, H, W = x_nchw.shape
    WC = W * C
    # Lane-dense packing (pure layout plumbing; a channels-last caller skips it).
    x_rows = jnp.transpose(x_nchw, (0, 2, 3, 1)).reshape(N, H, WC)

    out_rows = pl.pallas_call(
        _residual_block_kernel,
        out_shape=jax.ShapeDtypeStruct((N, H, WC), x_nchw.dtype),
        grid_spec=pltpu.PrefetchScalarGridSpec(
            num_scalar_prefetch=0,
            grid=(N,),
            in_specs=[
                pl.BlockSpec((1, H, WC), lambda n: (n, 0, 0)),
                pl.BlockSpec((2, H, H), lambda n: (0, 0, 0)),
                pl.BlockSpec((3, 3, WC, WC), lambda n: (0, 0, 0, 0)),
                pl.BlockSpec((3, 1, WC), lambda n: (0, 0, 0)),
            ],
            out_specs=pl.BlockSpec((1, H, WC), lambda n: (n, 0, 0)),
        ),
        compiler_params=pltpu.CompilerParams(
            dimension_semantics=("parallel",)),
    )(x_rows, shifts, bands, bias_rows)

    return jnp.transpose(out_rows.reshape(N, H, W, C), (0, 3, 1, 2))


# ----------------------------------------------------------------------------
# Host-side weight preprocessing (done once, outside the kernel)
# ----------------------------------------------------------------------------
def _band_matrices(w_oihw, W):
    """Fold an OIHW 3x3 weight into 3 banded (W*Cin, W*Cout) matrices, one per kh.

    B_kh[(w+kw-1)*Cin + ci, w*Cout + co] = w[co, ci, kh, kw]; out-of-range taps
    (the W-direction zero padding) are simply absent from the band.
    """
    rows = []
    for kh in range(3):
        B = None
        for kw in range(3):
            # P[src, w] = 1  iff  src == w + kw - 1
            P = jnp.eye(W, W, k=1 - kw, dtype=jnp.float32)
            term = jnp.kron(P, jnp.transpose(w_oihw[:, :, kh, kw]).astype(jnp.float32))
            B = term if B is None else B + term
        rows.append(B)
    return jnp.stack(rows)                                  # (3, W*Cin, W*Cout)


def pack_params(params_oihw, H, W):
    w1, b1, w2, b2, w3, b3 = params_oihw
    C = w1.shape[0]
    WC = W * C
    bands = jnp.stack([_band_matrices(w, W) for w in (w1, w2, w3)])         # (3,3,WC,WC)
    bias_rows = jnp.stack(
        [jnp.tile(b.astype(jnp.float32), W).reshape(1, WC) for b in (b1, b2, b3)])  # (3,1,WC)
    shifts = jnp.stack([jnp.eye(H, k=-1, dtype=jnp.float32),                # -> row h-1
                        jnp.eye(H, k=1, dtype=jnp.float32)])                # -> row h+1
    return bands, bias_rows, shifts


def spectral_normalize(w_oihw, key, n_iter=5, eps=1e-12):
    """Inference-time spectral norm (PyTorch-style power iteration): W / sigma."""
    o = w_oihw.shape[0]
    w_mat = w_oihw.reshape(o, -1)
    u = jax.random.normal(key, (o,), dtype=w_oihw.dtype)
    u = u / (jnp.linalg.norm(u) + eps)
    v = None
    for _ in range(n_iter):
        v = w_mat.T @ u
        v = v / (jnp.linalg.norm(v) + eps)
        u = w_mat @ v
        u = u / (jnp.linalg.norm(u) + eps)
    sigma = u @ (w_mat @ v)
    return w_oihw / sigma


# ----------------------------------------------------------------------------
# Pure-JAX reference (lax.conv) for correctness check
# ----------------------------------------------------------------------------
def _conv_ref(x_nchw, w_oihw, b):
    y = lax.conv_general_dilated(
        x_nchw, w_oihw, window_strides=(1, 1), padding="SAME",
        dimension_numbers=("NCHW", "OIHW", "NCHW"))
    return y + b[None, :, None, None]


def _ref_forward(x, params_oihw):
    w1, b1, w2, b2, w3, b3 = params_oihw
    t = _conv_ref(x, w1, b1)                 # conv1
    t = _conv_ref(t, w2, b2)                 # conv2 (spectral-normed weight)
    t = jnp.maximum(t, 0.0)                  # ReLU
    t = _conv_ref(t, w3, b3)                 # conv3
    return jnp.maximum(x + t, 0.0)           # residual + ReLU


# ----------------------------------------------------------------------------
if __name__ == "__main__":
    key = jax.random.PRNGKey(0)
    kx, kw1, kb1, kw2, kb2, kw3, kb3, ku = jax.random.split(key, 8)

    N, C, H, W = 2, 8, 16, 16                # ResidualBlock(channels=8), 16x16 maps

    x = jax.random.normal(kx, (N, C, H, W), dtype=jnp.float32)

    # PyTorch-convention OIHW weights; only conv2 is spectral-normalized.
    w1 = 0.1 * jax.random.normal(kw1, (C, C, 3, 3), jnp.float32)
    b1 = 0.05 * jax.random.normal(kb1, (C,), jnp.float32)
    w2 = spectral_normalize(0.1 * jax.random.normal(kw2, (C, C, 3, 3), jnp.float32), ku)
    b2 = 0.05 * jax.random.normal(kb2, (C,), jnp.float32)
    w3 = 0.1 * jax.random.normal(kw3, (C, C, 3, 3), jnp.float32)
    b3 = 0.05 * jax.random.normal(kb3, (C,), jnp.float32)
    params = (w1, b1, w2, b2, w3, b3)

    bands, bias_rows, shifts = pack_params(params, H, W)

    out = jax.block_until_ready(residual_block_pallas(x, bands, bias_rows, shifts))
    ref = jax.block_until_ready(_ref_forward(x, params))

    assert out.shape == (N, C, H, W), out.shape
    max_err = float(jnp.max(jnp.abs(out - ref)))
    assert jnp.allclose(out, ref, atol=1e-4, rtol=1e-4), max_err

    print("KERNEL_OK")
</pallas_src>

<mosaic_0001>
module attributes {stable_mosaic.version = 11 : i64} {
  func.func @_residual_block_kernel(%arg0: i32, %arg1: memref<1x16x128xf32, #tpu.memory_space<vmem>>, %arg2: memref<2x16x16xf32, #tpu.memory_space<vmem>>, %arg3: memref<3x3x128x128xf32, #tpu.memory_space<vmem>>, %arg4: memref<3x1x128xf32, #tpu.memory_space<vmem>>, %arg5: memref<1x16x128xf32, #tpu.memory_space<vmem>>) attributes {dimension_semantics = [#tpu.dimension_semantics<parallel>], iteration_bounds = array<i64: 2>, scalar_prefetch = 0 : i64, scratch_operands = 0 : i64, tpu.core_type = #tpu.core_type<tc>, window_params = [{transform_indices = @transform_0, window_bounds = array<i64: 1, 16, 128>}, {pipeline_mode = #tpu.pipeline_mode<synchronous>, transform_indices = @transform_1, window_bounds = array<i64: 2, 16, 16>}, {pipeline_mode = #tpu.pipeline_mode<synchronous>, transform_indices = @transform_2, window_bounds = array<i64: 3, 3, 128, 128>}, {pipeline_mode = #tpu.pipeline_mode<synchronous>, transform_indices = @transform_3, window_bounds = array<i64: 3, 1, 128>}, {transform_indices = @transform_4, window_bounds = array<i64: 1, 16, 128>}]} {
    %c0 = arith.constant 0 : index
    %c0_0 = arith.constant 0 : index
    %c0_1 = arith.constant 0 : index
    %0 = vector.load %arg1[%c0, %c0_0, %c0_1] : memref<1x16x128xf32, #tpu.memory_space<vmem>>, vector<1x16x128xf32>
    %1 = vector.shape_cast %0 : vector<1x16x128xf32> to vector<16x128xf32>
    %c0_2 = arith.constant 0 : index
    %c0_3 = arith.constant 0 : index
    %c0_4 = arith.constant 0 : index
    %2 = vector.load %arg2[%c0_2, %c0_3, %c0_4] : memref<2x16x16xf32, #tpu.memory_space<vmem>>, vector<1x16x16xf32>
    %3 = vector.shape_cast %2 : vector<1x16x16xf32> to vector<16x16xf32>
    %c1 = arith.constant 1 : index
    %c0_5 = arith.constant 0 : index
    %c0_6 = arith.constant 0 : index
    %4 = vector.load %arg2[%c1, %c0_5, %c0_6] : memref<2x16x16xf32, #tpu.memory_space<vmem>>, vector<1x16x16xf32>
    %5 = vector.shape_cast %4 : vector<1x16x16xf32> to vector<16x16xf32>
    %c0_7 = arith.constant 0 : index
    %c0_8 = arith.constant 0 : index
    %c0_9 = arith.constant 0 : index
    %c0_10 = arith.constant 0 : index
    %6 = vector.load %arg3[%c0_7, %c0_8, %c0_9, %c0_10] : memref<3x3x128x128xf32, #tpu.memory_space<vmem>>, vector<1x1x128x128xf32>
    %7 = vector.shape_cast %6 : vector<1x1x128x128xf32> to vector<128x128xf32>
    %cst = arith.constant dense<0.000000e+00> : vector<16x128xf32>
    %8 = tpu.matmul %1, %7, %cst {dimension_numbers = #tpu.dot_dimension_numbers<[1], [0], [0], [1], [0, 0, 1, 1], [], []>} : vector<16x128xf32>, vector<128x128xf32>, vector<16x128xf32> -> vector<16x128xf32>
    %c0_11 = arith.constant 0 : index
    %c1_12 = arith.constant 1 : index
    %c0_13 = arith.constant 0 : index
    %c0_14 = arith.constant 0 : index
    %9 = vector.load %arg3[%c0_11, %c1_12, %c0_13, %c0_14] : memref<3x3x128x128xf32, #tpu.memory_space<vmem>>, vector<1x1x128x128xf32>
    %10 = vector.shape_cast %9 : vector<1x1x128x128xf32> to vector<128x128xf32>
    %cst_15 = arith.constant dense<0.000000e+00> : vector<16x128xf32>
    %11 = tpu.matmul %1, %10, %cst_15 {dimension_numbers = #tpu.dot_dimension_numbers<[1], [0], [0], [1], [0, 0, 1, 1], [], []>} : vector<16x128xf32>, vector<128x128xf32>, vector<16x128xf32> -> vector<16x128xf32>
    %c0_16 = arith.constant 0 : index
    %c2 = arith.constant 2 : index
    %c0_17 = arith.constant 0 : index
    %c0_18 = arith.constant 0 : index
    %12 = vector.load %arg3[%c0_16, %c2, %c0_17, %c0_18] : memref<3x3x128x128xf32, #tpu.memory_space<vmem>>, vector<1x1x128x128xf32>
    %13 = vector.shape_cast %12 : vector<1x1x128x128xf32> to vector<128x128xf32>
    %cst_19 = arith.constant dense<0.000000e+00> : vector<16x128xf32>
    %14 = tpu.matmul %1, %13, %cst_19 {dimension_numbers = #tpu.dot_dimension_numbers<[1], [0], [0], [1], [0, 0, 1, 1], [], []>} : vector<16x128xf32>, vector<128x128xf32>, vector<16x128xf32> -> vector<16x128xf32>
    %cst_20 = arith.constant dense<0.000000e+00> : vector<16x128xf32>
    %15 = tpu.matmul %3, %8, %cst_20 {dimension_numbers = #tpu.dot_dimension_numbers<[1], [0], [0], [1], [0, 0, 1, 1], [], []>} : vector<16x16xf32>, vector<16x128xf32>, vector<16x128xf32> -> vector<16x128xf32>
    %16 = arith.addf %15, %11 : vector<16x128xf32>
    %cst_21 = arith.constant dense<0.000000e+00> : vector<16x128xf32>
    %17 = tpu.matmul %5, %14, %cst_21 {dimension_numbers = #tpu.dot_dimension_numbers<[1], [0], [0], [1], [0, 0, 1, 1], [], []>} : vector<16x16xf32>, vector<16x128xf32>, vector<16x128xf32> -> vector<16x128xf32>
    %18 = arith.addf %16, %17 : vector<16x128xf32>
    %c0_22 = arith.constant 0 : index
    %c0_23 = arith.constant 0 : index
    %c0_24 = arith.constant 0 : index
    %19 = vector.load %arg4[%c0_22, %c0_23, %c0_24] : memref<3x1x128xf32, #tpu.memory_space<vmem>>, vector<1x1x128xf32>
    %20 = vector.shape_cast %19 : vector<1x1x128xf32> to vector<1x128xf32>
    %21 = vector.broadcast %20 : vector<1x128xf32> to vector<16x128xf32>
    %22 = arith.addf %18, %21 : vector<16x128xf32>
    %c1_25 = arith.constant 1 : index
    %c0_26 = arith.constant 0 : index
    %c0_27 = arith.constant 0 : index
    %c0_28 = arith.constant 0 : index
    %23 = vector.load %arg3[%c1_25, %c0_26, %c0_27, %c0_28] : memref<3x3x128x128xf32, #tpu.memory_space<vmem>>, vector<1x1x128x128xf32>
    %24 = vector.shape_cast %23 : vector<1x1x128x128xf32> to vector<128x128xf32>
    %cst_29 = arith.constant dense<0.000000e+00> : vector<16x128xf32>
    %25 = tpu.matmul %22, %24, %cst_29 {dimension_numbers = #tpu.dot_dimension_numbers<[1], [0], [0], [1], [0, 0, 1, 1], [], []>} : vector<16x128xf32>, vector<128x128xf32>, vector<16x128xf32> -> vector<16x128xf32>
    %c1_30 = arith.constant 1 : index
    %c1_31 = arith.constant 1 : index
    %c0_32 = arith.constant 0 : index
    %c0_33 = arith.constant 0 : index
    %26 = vector.load %arg3[%c1_30, %c1_31, %c0_32, %c0_33] : memref<3x3x128x128xf32, #tpu.memory_space<vmem>>, vector<1x1x128x128xf32>
    %27 = vector.shape_cast %26 : vector<1x1x128x128xf32> to vector<128x128xf32>
    %cst_34 = arith.constant dense<0.000000e+00> : vector<16x128xf32>
    %28 = tpu.matmul %22, %27, %cst_34 {dimension_numbers = #tpu.dot_dimension_numbers<[1], [0], [0], [1], [0, 0, 1, 1], [], []>} : vector<16x128xf32>, vector<128x128xf32>, vector<16x128xf32> -> vector<16x128xf32>
    %c1_35 = arith.constant 1 : index
    %c2_36 = arith.constant 2 : index
    %c0_37 = arith.constant 0 : index
    %c0_38 = arith.constant 0 : index
    %29 = vector.load %arg3[%c1_35, %c2_36, %c0_37, %c0_38] : memref<3x3x128x128xf32, #tpu.memory_space<vmem>>, vector<1x1x128x128xf32>
    %30 = vector.shape_cast %29 : vector<1x1x128x128xf32> to vector<128x128xf32>
    %cst_39 = arith.constant dense<0.000000e+00> : vector<16x128xf32>
    %31 = tpu.matmul %22, %30, %cst_39 {dimension_numbers = #tpu.dot_dimension_numbers<[1], [0], [0], [1], [0, 0, 1, 1], [], []>} : vector<16x128xf32>, vector<128x128xf32>, vector<16x128xf32> -> vector<16x128xf32>
    %cst_40 = arith.constant dense<0.000000e+00> : vector<16x128xf32>
    %32 = tpu.matmul %3, %25, %cst_40 {dimension_numbers = #tpu.dot_dimension_numbers<[1], [0], [0], [1], [0, 0, 1, 1], [], []>} : vector<16x16xf32>, vector<16x128xf32>, vector<16x128xf32> -> vector<16x128xf32>
    %33 = arith.addf %32, %28 : vector<16x128xf32>
    %cst_41 = arith.constant dense<0.000000e+00> : vector<16x128xf32>
    %34 = tpu.matmul %5, %31, %cst_41 {dimension_numbers = #tpu.dot_dimension_numbers<[1], [0], [0], [1], [0, 0, 1, 1], [], []>} : vector<16x16xf32>, vector<16x128xf32>, vector<16x128xf32> -> vector<16x128xf32>
    %35 = arith.addf %33, %34 : vector<16x128xf32>
    %c1_42 = arith.constant 1 : index
    %c0_43 = arith.constant 0 : index
    %c0_44 = arith.constant 0 : index
    %36 = vector.load %arg4[%c1_42, %c0_43, %c0_44] : memref<3x1x128xf32, #tpu.memory_space<vmem>>, vector<1x1x128xf32>
    %37 = vector.shape_cast %36 : vector<1x1x128xf32> to vector<1x128xf32>
    %38 = vector.broadcast %37 : vector<1x128xf32> to vector<16x128xf32>
    %39 = arith.addf %35, %38 : vector<16x128xf32>
    %cst_45 = arith.constant 0.000000e+00 : f32
    %40 = vector.broadcast %cst_45 : f32 to vector<16x128xf32>
    %41 = arith.maximumf %39, %40 : vector<16x128xf32>
    %c2_46 = arith.constant 2 : index
    %c0_47 = arith.constant 0 : index
    %c0_48 = arith.constant 0 : index
    %c0_49 = arith.constant 0 : index
    %42 = vector.load %arg3[%c2_46, %c0_47, %c0_48, %c0_49] : memref<3x3x128x128xf32, #tpu.memory_space<vmem>>, vector<1x1x128x128xf32>
    %43 = vector.shape_cast %42 : vector<1x1x128x128xf32> to vector<128x128xf32>
    %cst_50 = arith.constant dense<0.000000e+00> : vector<16x128xf32>
    %44 = tpu.matmul %41, %43, %cst_50 {dimension_numbers = #tpu.dot_dimension_numbers<[1], [0], [0], [1], [0, 0, 1, 1], [], []>} : vector<16x128xf32>, vector<128x128xf32>, vector<16x128xf32> -> vector<16x128xf32>
    %c2_51 = arith.constant 2 : index
    %c1_52 = arith.constant 1 : index
    %c0_53 = arith.constant 0 : index
    %c0_54 = arith.constant 0 : index
    %45 = vector.load %arg3[%c2_51, %c1_52, %c0_53, %c0_54] : memref<3x3x128x128xf32, #tpu.memory_space<vmem>>, vector<1x1x128x128xf32>
    %46 = vector.shape_cast %45 : vector<1x1x128x128xf32> to vector<128x128xf32>
    %cst_55 = arith.constant dense<0.000000e+00> : vector<16x128xf32>
    %47 = tpu.matmul %41, %46, %cst_55 {dimension_numbers = #tpu.dot_dimension_numbers<[1], [0], [0], [1], [0, 0, 1, 1], [], []>} : vector<16x128xf32>, vector<128x128xf32>, vector<16x128xf32> -> vector<16x128xf32>
    %c2_56 = arith.constant 2 : index
    %c2_57 = arith.constant 2 : index
    %c0_58 = arith.constant 0 : index
    %c0_59 = arith.constant 0 : index
    %48 = vector.load %arg3[%c2_56, %c2_57, %c0_58, %c0_59] : memref<3x3x128x128xf32, #tpu.memory_space<vmem>>, vector<1x1x128x128xf32>
    %49 = vector.shape_cast %48 : vector<1x1x128x128xf32> to vector<128x128xf32>
    %cst_60 = arith.constant dense<0.000000e+00> : vector<16x128xf32>
    %50 = tpu.matmul %41, %49, %cst_60 {dimension_numbers = #tpu.dot_dimension_numbers<[1], [0], [0], [1], [0, 0, 1, 1], [], []>} : vector<16x128xf32>, vector<128x128xf32>, vector<16x128xf32> -> vector<16x128xf32>
    %cst_61 = arith.constant dense<0.000000e+00> : vector<16x128xf32>
    %51 = tpu.matmul %3, %44, %cst_61 {dimension_numbers = #tpu.dot_dimension_numbers<[1], [0], [0], [1], [0, 0, 1, 1], [], []>} : vector<16x16xf32>, vector<16x128xf32>, vector<16x128xf32> -> vector<16x128xf32>
    %52 = arith.addf %51, %47 : vector<16x128xf32>
    %cst_62 = arith.constant dense<0.000000e+00> : vector<16x128xf32>
    %53 = tpu.matmul %5, %50, %cst_62 {dimension_numbers = #tpu.dot_dimension_numbers<[1], [0], [0], [1], [0, 0, 1, 1], [], []>} : vector<16x16xf32>, vector<16x128xf32>, vector<16x128xf32> -> vector<16x128xf32>
    %54 = arith.addf %52, %53 : vector<16x128xf32>
    %c2_63 = arith.constant 2 : index
    %c0_64 = arith.constant 0 : index
    %c0_65 = arith.constant 0 : index
    %55 = vector.load %arg4[%c2_63, %c0_64, %c0_65] : memref<3x1x128xf32, #tpu.memory_space<vmem>>, vector<1x1x128xf32>
    %56 = vector.shape_cast %55 : vector<1x1x128xf32> to vector<1x128xf32>
    %57 = vector.broadcast %56 : vector<1x128xf32> to vector<16x128xf32>
    %58 = arith.addf %54, %57 : vector<16x128xf32>
    %59 = arith.addf %1, %58 : vector<16x128xf32>
    %cst_66 = arith.constant 0.000000e+00 : f32
    %60 = vector.broadcast %cst_66 : f32 to vector<16x128xf32>
    %61 = arith.maximumf %59, %60 : vector<16x128xf32>
    %62 = vector.shape_cast %61 : vector<16x128xf32> to vector<1x16x128xf32>
    %c0_67 = arith.constant 0 : index
    %c0_68 = arith.constant 0 : index
    %c0_69 = arith.constant 0 : index
    %63 = vector.load %arg5[%c0_67, %c0_68, %c0_69] : memref<1x16x128xf32, #tpu.memory_space<vmem>>, vector<1x16x128xf32>
    tpu.vector_store %arg5[%c0_67, %c0_68, %c0_69], %62 {strides = array<i32>} : memref<1x16x128xf32, #tpu.memory_space<vmem>>, vector<1x16x128xf32>,
    return
  }
  func.func @transform_0(%arg0: i32) -> (i32, i32, i32) {
    %c0_i32 = arith.constant 0 : i32
    %c0_i32_0 = arith.constant 0 : i32
    %c0_i32_1 = arith.constant 0 : i32
    return %arg0, %c0_i32, %c0_i32_0 : i32, i32, i32
  }
  func.func @transform_1(%arg0: i32) -> (i32, i32, i32) {
    %c0_i32 = arith.constant 0 : i32
    %c0_i32_0 = arith.constant 0 : i32
    %c0_i32_1 = arith.constant 0 : i32
    %c0_i32_2 = arith.constant 0 : i32
    return %c0_i32, %c0_i32_0, %c0_i32_1 : i32, i32, i32
  }
  func.func @transform_2(%arg0: i32) -> (i32, i32, i32, i32) {
    %c0_i32 = arith.constant 0 : i32
    %c0_i32_0 = arith.constant 0 : i32
    %c0_i32_1 = arith.constant 0 : i32
    %c0_i32_2 = arith.constant 0 : i32
    %c0_i32_3 = arith.constant 0 : i32
    return %c0_i32, %c0_i32_0, %c0_i32_1, %c0_i32_2 : i32, i32, i32, i32
  }
  func.func @transform_3(%arg0: i32) -> (i32, i32, i32) {
    %c0_i32 = arith.constant 0 : i32
    %c0_i32_0 = arith.constant 0 : i32
    %c0_i32_1 = arith.constant 0 : i32
    %c0_i32_2 = arith.constant 0 : i32
    return %c0_i32, %c0_i32_0, %c0_i32_1 : i32, i32, i32
  }
  func.func @transform_4(%arg0: i32) -> (i32, i32, i32) {
    %c0_i32 = arith.constant 0 : i32
    %c0_i32_0 = arith.constant 0 : i32
    %c0_i32_1 = arith.constant 0 : i32
    return %arg0, %c0_i32, %c0_i32_0 : i32, i32, i32
  }
}

</mosaic_0001>

<llo_original>
// kernel: tpu_custom_call.1
$region0: #{tpu_custom_call.1}
  #allocation0 [shape = 'u32[]', space=smem, size = 0x4, offset = 0x4, fixed_abs, tag = 'smem constant byte address 0x4 - core index']
  #allocation1 [shape = 'u32[144,128]{1,0:T(1,128)}', space=vmem, size = 0x12000, scoped, tag = 'internal scratch']
  %s0 = inlined_call_operand.hbm [shape: f32[2,16,128], index: 0, kind: input, shape index: {}]
  %s1 = inlined_call_operand.hbm [shape: f32[2,16,16], index: 1, kind: input, shape index: {}]
  %s2 = inlined_call_operand.hbm [shape: f32[3,3,128,128], index: 2, kind: input, shape index: {}]
  %s3 = inlined_call_operand.vmem [shape: f32[3,1,128], index: 3, kind: input, shape index: {}]
  %s4 = inlined_call_operand.hbm [shape: f32[2,16,128], index: 4, kind: output, shape index: {}]
  %s5 = sld [smem:[#allocation0]]
  $region61: #{tpu_custom_call.1} parent=0
    _
  %s7 = ssub.s32 1, %s5
  %s8 = scalar_select 0, %s7, %s5
  $region1: #{tpu_custom_call.1} parent=0
    #allocation2 [shape = 'u8[16384]{0}', space=vmem, size = 0x4000, scoped, tag = 'input window, operand 0']
    #allocation3 [shape = 's32[2]{0}', space=sflag, size = 0x8, scoped, tag = 'scoped memory for tpu_custom_call.1']
    #allocation4 [shape = 's32[2]{0}', space=sflag, size = 0x8, scoped, tag = 'scoped memory for tpu_custom_call.1']
    #allocation5 [shape = 'u8[16384]{0}', space=vmem, size = 0x4000, scoped, tag = 'input window, operand 1, single buffered']
    #allocation6 [shape = 's32[1]{0}', space=sflag, size = 0x4, scoped, tag = 'scoped memory for tpu_custom_call.1']
    #allocation7 [shape = 'u8[589824]{0}', space=vmem, size = 0x90000, scoped, tag = 'input window, operand 2, single buffered']
    #allocation8 [shape = 'u8[16384]{0}', space=vmem, size = 0x4000, scoped, tag = 'output window, operand 0']
    %9 = vsyncpa [#allocation3], 0
    %s10 = scalar_lea.sflag [#allocation3], 1
    %11 = vsyncpa %s10, 0
    %12 = vsyncpa [#allocation6], 0
    %13 = vsyncpa [#allocation4], 0
    %s14 = scalar_lea.sflag [#allocation4], 1
    %15 = vsyncpa %s14, 0
    loop: start=0, step=1, limit=4
    $region2: #{tpu_custom_call.1} parent=1 // loop_pre_header
      _
    $region3: #{tpu_custom_call.1} parent=1 // loop_header
      %s17 = sphi 0, %s21
      %p18 = scmp.ge.s32.totalorder %s17, 4
      %s27 = sphi 0, %s29
      %s30 = sphi 0, %s27
      %s31 = sphi 0, %s30
      %s47 = sphi 0, %s31
      %s51 = sphi 0, %s51
      %s53 = sphi 0, %s51
      %s54 = sphi 0, %s53
      %s68 = sphi 0, %s54
      %s72 = sphi 0, %s72
      %s74 = sphi 0, %s72
      %s75 = sphi 0, %s74
      %s89 = sphi 0, %s75
      %s93 = sphi 0, %s93
      %s95 = sphi 0, %s93
      %s96 = sphi 0, %s95
      %s110 = sphi 0, %s96
      %s116 = sphi 0, %s118
      %s119 = sphi 0, %s116
      %s120 = sphi 0, %s119
      %s136 = sphi 0, %s120
    $region4: #{tpu_custom_call.1} parent=1 // loop_header_branch
      %20 = sbr.rel (%p18) target = $region8
    $region5: #{tpu_custom_call.1} parent=1 // loop_body
      %s22 = ssub.s32 %s17, 1
      %s23 = ssub.s32 %s17, 2
      %s24 = sadd.s32 %s17, 1
      %s25 = ssub.s32 %s17, %s24
      %p26 = scmp.eq.s32.totalorder %s25, 0
      %s28 = sadd.s32 %s27, 1
      %s29 = scalar_select %p26, %s27, %s28
      %p32 = pneg %p26
      %p33 = scmp.eq.s32.totalorder %s17, 1
      %p34 = por %p32, %p33
      %p35 = scmp.ne.s32.totalorder %s27, %s30
      %p36 = scmp.eq.s32.totalorder %s17, 0
      %p37 = por %p35, %p36
      %p38 = scmp.ne.s32.totalorder %s27, %s30
      %p39 = scmp.eq.s32.totalorder %s22, 1
      %p40 = por %p38, %p39
      %p41 = scmp.ne.s32.totalorder %s30, %s31
      %p42 = scmp.eq.s32.totalorder %s22, 0
      %p43 = por %p41, %p42
      %p44 = scmp.ne.s32.totalorder %s30, %s31
      %p45 = scmp.eq.s32.totalorder %s23, 1
      %p46 = por %p44, %p45
      %p48 = scmp.ne.s32.totalorder %s31, %s47
      %p49 = scmp.eq.s32.totalorder %s23, 0
      %p50 = por %p48, %p49
      %s52 = sadd.s32 %s51, 1
      %p55 = scmp.eq.s32.totalorder %s17, 1
      %p56 = scmp.ne.s32.totalorder %s51, %s53
      %p57 = scmp.eq.s32.totalorder %s17, 0
      %p58 = por %p56, %p57
      %p59 = scmp.ne.s32.totalorder %s51, %s53
      %p60 = scmp.eq.s32.totalorder %s22, 1
      %p61 = por %p59, %p60
      %p62 = scmp.ne.s32.totalorder %s53, %s54
      %p63 = scmp.eq.s32.totalorder %s22, 0
      %p64 = por %p62, %p63
      %p65 = scmp.ne.s32.totalorder %s53, %s54
      %p66 = scmp.eq.s32.totalorder %s23, 1
      %p67 = por %p65, %p66
      %p69 = scmp.ne.s32.totalorder %s54, %s68
      %p70 = scmp.eq.s32.totalorder %s23, 0
      %p71 = por %p69, %p70
      %s73 = sadd.s32 %s72, 1
      %p76 = scmp.eq.s32.totalorder %s17, 1
      %p77 = scmp.ne.s32.totalorder %s72, %s74
      %p78 = scmp.eq.s32.totalorder %s17, 0
      %p79 = por %p77, %p78
      %p80 = scmp.ne.s32.totalorder %s72, %s74
      %p81 = scmp.eq.s32.totalorder %s22, 1
      %p82 = por %p80, %p81
      %p83 = scmp.ne.s32.totalorder %s74, %s75
      %p84 = scmp.eq.s32.totalorder %s22, 0
      %p85 = por %p83, %p84
      %p86 = scmp.ne.s32.totalorder %s74, %s75
      %p87 = scmp.eq.s32.totalorder %s23, 1
      %p88 = por %p86, %p87
      %p90 = scmp.ne.s32.totalorder %s75, %s89
      %p91 = scmp.eq.s32.totalorder %s23, 0
      %p92 = por %p90, %p91
      %s94 = sadd.s32 %s93, 1
      %p97 = scmp.eq.s32.totalorder %s17, 1
      %p98 = scmp.ne.s32.totalorder %s93, %s95
      %p99 = scmp.eq.s32.totalorder %s17, 0
      %p100 = por %p98, %p99
      %p101 = scmp.ne.s32.totalorder %s93, %s95
      %p102 = scmp.eq.s32.totalorder %s22, 1
      %p103 = por %p101, %p102
      %p104 = scmp.ne.s32.totalorder %s95, %s96
      %p105 = scmp.eq.s32.totalorder %s22, 0
      %p106 = por %p104, %p105
      %p107 = scmp.ne.s32.totalorder %s95, %s96
      %p108 = scmp.eq.s32.totalorder %s23, 1
      %p109 = por %p107, %p108
      %p111 = scmp.ne.s32.totalorder %s96, %s110
      %p112 = scmp.eq.s32.totalorder %s23, 0
      %p113 = por %p111, %p112
      %s114 = ssub.s32 %s17, %s24
      %p115 = scmp.eq.s32.totalorder %s114, 0
      %s117 = sadd.s32 %s116, 1
      %s118 = scalar_select %p115, %s116, %s117
      %p121 = pneg %p115
      %p122 = scmp.eq.s32.totalorder %s17, 1
      %p123 = por %p121, %p122
      %p124 = scmp.ne.s32.totalorder %s116, %s119
      %p125 = scmp.eq.s32.totalorder %s17, 0
      %p126 = por %p124, %p125
      %p127 = scmp.ne.s32.totalorder %s116, %s119
      %p128 = scmp.eq.s32.totalorder %s22, 1
      %p129 = por %p127, %p128
      %p130 = scmp.ne.s32.totalorder %s119, %s120
      %p131 = scmp.eq.s32.totalorder %s22, 0
      %p132 = por %p130, %p131
      %p133 = scmp.ne.s32.totalorder %s119, %s120
      %p134 = scmp.eq.s32.totalorder %s23, 1
      %p135 = por %p133, %p134
      %p137 = scmp.ne.s32.totalorder %s120, %s136
      %p138 = scmp.eq.s32.totalorder %s23, 0
      %p139 = por %p137, %p138
      %p140 = scmp.le.s32.totalorder 1, %s17
      %p141 = scmp.lt.s32.totalorder %s17, 3
      %p142 = pnand %p140, %p141
      %p143 = pneg %p142
      // Predicated region
      $region9: #{tpu_custom_call.1} parent=5 // pred_check
        _
      $region10: #{tpu_custom_call.1} parent=5 // pred_check_branch
        %145 = sbr.rel (%p142) target = $region12
      $region11: #{tpu_custom_call.1} parent=5 // pred_region
        %s146 = ssub.s32 %s17, 1
        // Predicated region
        $region13: #{tpu_custom_call.1} parent=11 // pred_check
          %p147 = pneg %p64
        $region14: #{tpu_custom_call.1} parent=11 // pred_check_branch
          %149 = sbr.rel (%p147) target = $region16
        $region15: #{tpu_custom_call.1} parent=11 // pred_region
          %s151 = ssub.s32 512, 512
          %152 = vsyncadd [#allocation6], %s151
          %s153 = sshll.u32 [#allocation5], 4
          %s154 = int_to_ptr.vmem [resolvable:$true] %s153
          %159 = dma.hbm_to_vmem [thread:$0]  %s1, 512, %s154, [#allocation6], 128, 128, 8
        $region16: #{tpu_custom_call.1} parent=11 // pred_fallthru
          _
        // Predicated region
        $region17: #{tpu_custom_call.1} parent=11 // pred_check
          %p160 = pneg %p85
        $region18: #{tpu_custom_call.1} parent=11 // pred_check_branch
          %162 = sbr.rel (%p160) target = $region20
        $region19: #{tpu_custom_call.1} parent=11 // pred_region
          %s164 = ssub.s32 18432, 18432
          %165 = vsyncadd [#allocation6], %s164
          %s166 = sshll.u32 [#allocation7], 4
          %s167 = int_to_ptr.vmem [resolvable:$true] %s166
          %172 = dma.hbm_to_vmem [thread:$0]  %s2, 18432, %s167, [#allocation6], 128, 128, 8
        $region20: #{tpu_custom_call.1} parent=11 // pred_fallthru
          _
        // Predicated region
        $region21: #{tpu_custom_call.1} parent=11 // pred_check
          %p173 = pneg %p106
        $region22: #{tpu_custom_call.1} parent=11 // pred_check_branch
          %175 = sbr.rel (%p173) target = $region24
        $region23: #{tpu_custom_call.1} parent=11 // pred_region
          _
        $region24: #{tpu_custom_call.1} parent=11 // pred_fallthru
          _
      $region12: #{tpu_custom_call.1} parent=5 // pred_fallthru
        _
      %p176 = scmp.lt.s32.totalorder %s17, 2
      // Predicated region
      $region25: #{tpu_custom_call.1} parent=5 // pred_check
        %p177 = pneg %p176
      $region26: #{tpu_custom_call.1} parent=5 // pred_check_branch
        %179 = sbr.rel (%p177) target = $region28
      $region27: #{tpu_custom_call.1} parent=5 // pred_region
        // Predicated region
        $region29: #{tpu_custom_call.1} parent=27 // pred_check
          %p180 = pneg %p37
        $region30: #{tpu_custom_call.1} parent=27 // pred_check_branch
          %182 = sbr.rel (%p180) target = $region32
        $region31: #{tpu_custom_call.1} parent=27 // pred_region
          %s183 = sand.u32 %s27, 1
          %s184 = scalar_lea.sflag [#allocation3], %s183
          %s185 = sand.u32 %s27, 1
          %s186 = smul.addr %s185, 16
          %s187 = scalar_lea.vmem [#allocation2], %s186
          %s189 = ssub.s32 256, 256
          %190 = vsyncadd %s184, %s189
          %s191 = smul.addr %s17, 2
          %s192 = smul.addr %s191, 128
          %s193 = scalar_lea.hbm %s0, %s192
          %s194 = sshll.u32 %s187, 4
          %s195 = int_to_ptr.vmem [resolvable:$true] %s194
          %200 = dma.hbm_to_vmem [thread:$0]  %s193, 256, %s195, %s184, 128, 128, 8
        $region32: #{tpu_custom_call.1} parent=27 // pred_fallthru
          _
      $region28: #{tpu_custom_call.1} parent=5 // pred_fallthru
        _
      %p201 = scmp.le.s32.totalorder 1, %s17
      %p202 = scmp.lt.s32.totalorder %s17, 3
      %p203 = pnand %p201, %p202
      %p204 = pneg %p203
      // Predicated region
      $region33: #{tpu_custom_call.1} parent=5 // pred_check
        _
      $region34: #{tpu_custom_call.1} parent=5 // pred_check_branch
        %206 = sbr.rel (%p203) target = $region36
      $region35: #{tpu_custom_call.1} parent=5 // pred_region
        %s207 = ssub.s32 %s17, 1
        %s208 = sand.u32 %s30, 1
        %s209 = scalar_lea.sflag [#allocation3], %s208
        %s210 = sand.u32 %s30, 1
        %s211 = smul.addr %s210, 16
        %s212 = scalar_lea.vmem [#allocation2], %s211
        // Predicated region
        $region37: #{tpu_custom_call.1} parent=35 // pred_check
          %p213 = pneg %p43
        $region38: #{tpu_custom_call.1} parent=35 // pred_check_branch
          %215 = sbr.rel (%p213) target = $region40
        $region39: #{tpu_custom_call.1} parent=35 // pred_region
          %216 = dma.done %s209, 256
        $region40: #{tpu_custom_call.1} parent=35 // pred_fallthru
          _
        // Predicated region
        $region41: #{tpu_custom_call.1} parent=35 // pred_check
          %p217 = pneg %p64
        $region42: #{tpu_custom_call.1} parent=35 // pred_check_branch
          %219 = sbr.rel (%p217) target = $region44
        $region43: #{tpu_custom_call.1} parent=35 // pred_region
          %220 = dma.done [#allocation6], 512
        $region44: #{tpu_custom_call.1} parent=35 // pred_fallthru
          _
        // Predicated region
        $region45: #{tpu_custom_call.1} parent=35 // pred_check
          %p221 = pneg %p85
        $region46: #{tpu_custom_call.1} parent=35 // pred_check_branch
          %223 = sbr.rel (%p221) target = $region48
        $region47: #{tpu_custom_call.1} parent=35 // pred_region
          %224 = dma.done [#allocation6], 18432
        $region48: #{tpu_custom_call.1} parent=35 // pred_fallthru
          _
        %s225 = sand.u32 %s30, 1
        %s226 = scalar_lea.sflag [#allocation3], %s225
        %s227 = sand.u32 %s30, 1
        %s228 = smul.addr %s227, 16
        %s229 = scalar_lea.vmem [#allocation2], %s228
        %p230 = pneg %p43
        %p231 = pneg %p40
        %p232 = pneg %p64
        %p233 = pneg %p61
        %p234 = pneg %p85
        %p235 = pneg %p82
        %p236 = pneg %p106
        %p237 = pneg %p103
        %p238 = pneg %p132
        %p239 = pneg %p129
        %s240 = sand.u32 %s119, 1
        %s241 = scalar_lea.sflag [#allocation4], %s240
        %s242 = sand.u32 %s119, 1
        %s243 = smul.addr %s242, 16
        %s244 = scalar_lea.vmem [#allocation8], %s243
        %v245 = vld [vmem:[%s212] sm:$0xff]
        %v246 = vld [vmem:[%s212 + $0x8] sm:$0xff]
        %v247 = vld [vmem:[#allocation5] sm:$0xff]
        %v248 = vld [vmem:[#allocation5 + $0x8] sm:$0xff]
        %s249 = scalar_lea.vmem [#allocation5], 16
        %v250 = vld [vmem:[%s249] sm:$0xff]
        %v251 = vld [vmem:[%s249 + $0x8] sm:$0xff]
        %v252 = vld [vmem:[#allocation7] sm:$0xff]
        %v253 = vld [vmem:[#allocation7 + $0x8] sm:$0xff]
        %v254 = vld [vmem:[#allocation7 + $0x10] sm:$0xff]
        %v255 = vld [vmem:[#allocation7 + $0x18] sm:$0xff]
        %v256 = vld [vmem:[#allocation7 + $0x20] sm:$0xff]
        %v257 = vld [vmem:[#allocation7 + $0x28] sm:$0xff]
        %v258 = vld [vmem:[#allocation7 + $0x30] sm:$0xff]
        %v259 = vld [vmem:[#allocation7 + $0x38] sm:$0xff]
        %v260 = vld [vmem:[#allocation7 + $0x40] sm:$0xff]
        %v261 = vld [vmem:[#allocation7 + $0x48] sm:$0xff]
        %v262 = vld [vmem:[#allocation7 + $0x50] sm:$0xff]
        %v263 = vld [vmem:[#allocation7 + $0x58] sm:$0xff]
        %v264 = vld [vmem:[#allocation7 + $0x60] sm:$0xff]
        %v265 = vld [vmem:[#allocation7 + $0x68] sm:$0xff]
        %v266 = vld [vmem:[#allocation7 + $0x70] sm:$0xff]
        %v267 = vld [vmem:[#allocation7 + $0x78] sm:$0xff]
        %268 = vmatprep.subr.mxu0 0.0
        %269 = vmatpush1.msra.mxu0 %v252
        %270 = vmatprep.subr.mxu0 0.0
        %271 = vmatpush1.msra.mxu0 %v253
        %272 = vmatprep.subr.mxu0 0.0
        %273 = vmatpush1.msra.mxu0 %v254
        %274 = vmatprep.subr.mxu0 0.0
        %275 = vmatpush1.msra.mxu0 %v255
        %276 = vmatprep.subr.mxu0 0.0
        %277 = vmatpush1.msra.mxu0 %v256
        %278 = vmatprep.subr.mxu0 0.0
        %279 = vmatpush1.msra.mxu0 %v257
        %280 = vmatprep.subr.mxu0 0.0
        %281 = vmatpush1.msra.mxu0 %v258
        %282 = vmatprep.subr.mxu0 0.0
        %283 = vmatpush1.msra.mxu0 %v259
        %284 = vmatprep.subr.mxu0 0.0
        %285 = vmatpush1.msra.mxu0 %v260
        %286 = vmatprep.subr.mxu0 0.0
        %287 = vmatpush1.msra.mxu0 %v261
        %288 = vmatprep.subr.mxu0 0.0
        %289 = vmatpush1.msra.mxu0 %v262
        %290 = vmatprep.subr.mxu0 0.0
        %291 = vmatpush1.msra.mxu0 %v263
        %292 = vmatprep.subr.mxu0 0.0
        %293 = vmatpush1.msra.mxu0 %v264
        %294 = vmatprep.subr.mxu0 0.0
        %295 = vmatpush1.msra.mxu0 %v265
        %296 = vmatprep.subr.mxu0 0.0
        %297 = vmatpush1.msra.mxu0 %v266
        %298 = vmatprep.subr.mxu0 0.0
        %299 = vmatpush1.msra.mxu0 %v267
        %300 = vmatprep.subr.mxu0 0.0
        %301 = vmatpush1.msra.mxu0 0.0
        %302 = vmatprep.subr.mxu0 0.0
        %303 = vmatpush1.msra.mxu0 0.0
        %304 = vmatprep.subr.mxu0 0.0
        %305 = vmatpush1.msra.mxu0 0.0
        %306 = vmatprep.subr.mxu0 0.0
        %307 = vmatpush1.msra.mxu0 0.0
        %308 = vmatprep.subr.mxu0 0.0
        %309 = vmatpush1.msra.mxu0 0.0
        %310 = vmatprep.subr.mxu0 0.0
        %311 = vmatpush1.msra.mxu0 0.0
        %312 = vmatprep.subr.mxu0 0.0
        %313 = vmatpush1.msra.mxu0 0.0
        %314 = vmatprep.subr.mxu0 0.0
        %315 = vmatpush1.msra.mxu0 0.0
        %316 = vmatprep.subr.mxu0 0.0
        %317 = vmatpush1.msra.mxu0 0.0
        %318 = vmatprep.subr.mxu0 0.0
        %319 = vmatpush1.msra.mxu0 0.0
        %320 = vmatprep.subr.mxu0 0.0
        %321 = vmatpush1.msra.mxu0 0.0
        %322 = vmatprep.subr.mxu0 0.0
        %323 = vmatpush1.msra.mxu0 0.0
        %324 = vmatprep.subr.mxu0 0.0
        %325 = vmatpush1.msra.mxu0 0.0
        %326 = vmatprep.subr.mxu0 0.0
        %327 = vmatpush1.msra.mxu0 0.0
        %328 = vmatprep.subr.mxu0 0.0
        %329 = vmatpush1.msra.mxu0 0.0
        %330 = vmatprep.subr.mxu0 0.0
        %331 = vmatpush1.msra.mxu0 0.0
        %332 = vmatprep.mubr.f32.mxu0 0.0
        %333 = vmatmul.mubr.f32.gmra.mrb[0].mxu0 %v245
        %v334 = vpop.f32.mrb[0].mxu0
        %v335 = vadd.f32 0.0, %v334
        %v336 = vpop.f32.mrb[0].mxu0
        %337 = vmatprep.mubr.f32.mxu0 0.0
        %338 = vmatmul.mubr.f32.gmra.mrb[0].mxu0 %v246
        %v339 = vpop.f32.mrb[0].mxu0
        %v340 = vadd.f32 0.0, %v339
        %v341 = vpop.f32.mrb[0].mxu0
        %342 = vdwg.mxu0
        %s343 = scalar_lea.vmem [#allocation7], 128
        %v344 = vld [vmem:[%s343] sm:$0xff]
        %v345 = vld [vmem:[%s343 + $0x8] sm:$0xff]
        %v346 = vld [vmem:[%s343 + $0x10] sm:$0xff]
        %v347 = vld [vmem:[%s343 + $0x18] sm:$0xff]
        %v348 = vld [vmem:[%s343 + $0x20] sm:$0xff]
        %v349 = vld [vmem:[%s343 + $0x28] sm:$0xff]
        %v350 = vld [vmem:[%s343 + $0x30] sm:$0xff]
        %v351 = vld [vmem:[%s343 + $0x38] sm:$0xff]
        %v352 = vld [vmem:[%s343 + $0x40] sm:$0xff]
        %v353 = vld [vmem:[%s343 + $0x48] sm:$0xff]
        %v354 = vld [vmem:[%s343 + $0x50] sm:$0xff]
        %v355 = vld [vmem:[%s343 + $0x58] sm:$0xff]
        %v356 = vld [vmem:[%s343 + $0x60] sm:$0xff]
        %v357 = vld [vmem:[%s343 + $0x68] sm:$0xff]
        %v358 = vld [vmem:[%s343 + $0x70] sm:$0xff]
        %v359 = vld [vmem:[%s343 + $0x78] sm:$0xff]
        %360 = vmatprep.subr.mxu0 0.0
        %361 = vmatpush1.msra.mxu0 %v344
        %362 = vmatprep.subr.mxu0 0.0
        %363 = vmatpush1.msra.mxu0 %v345
        %364 = vmatprep.subr.mxu0 0.0
        %365 = vmatpush1.msra.mxu0 %v346
        %366 = vmatprep.subr.mxu0 0.0
        %367 = vmatpush1.msra.mxu0 %v347
        %368 = vmatprep.subr.mxu0 0.0
        %369 = vmatpush1.msra.mxu0 %v348
        %370 = vmatprep.subr.mxu0 0.0
        %371 = vmatpush1.msra.mxu0 %v349
        %372 = vmatprep.subr.mxu0 0.0
        %373 = vmatpush1.msra.mxu0 %v350
        %374 = vmatprep.subr.mxu0 0.0
        %375 = vmatpush1.msra.mxu0 %v351
        %376 = vmatprep.subr.mxu0 0.0
        %377 = vmatpush1.msra.mxu0 %v352
        %378 = vmatprep.subr.mxu0 0.0
        %379 = vmatpush1.msra.mxu0 %v353
        %380 = vmatprep.subr.mxu0 0.0
        %381 = vmatpush1.msra.mxu0 %v354
        %382 = vmatprep.subr.mxu0 0.0
        %383 = vmatpush1.msra.mxu0 %v355
        %384 = vmatprep.subr.mxu0 0.0
        %385 = vmatpush1.msra.mxu0 %v356
        %386 = vmatprep.subr.mxu0 0.0
        %387 = vmatpush1.msra.mxu0 %v357
        %388 = vmatprep.subr.mxu0 0.0
        %389 = vmatpush1.msra.mxu0 %v358
        %390 = vmatprep.subr.mxu0 0.0
        %391 = vmatpush1.msra.mxu0 %v359
        %392 = vmatprep.subr.mxu0 0.0
        %393 = vmatpush1.msra.mxu0 0.0
        %394 = vmatprep.subr.mxu0 0.0
        %395 = vmatpush1.msra.mxu0 0.0
        %396 = vmatprep.subr.mxu0 0.0
        %397 = vmatpush1.msra.mxu0 0.0
        %398 = vmatprep.subr.mxu0 0.0
        %399 = vmatpush1.msra.mxu0 0.0
        %400 = vmatprep.subr.mxu0 0.0
        %401 = vmatpush1.msra.mxu0 0.0
        %402 = vmatprep.subr.mxu0 0.0
        %403 = vmatpush1.msra.mxu0 0.0
        %404 = vmatprep.subr.mxu0 0.0
        %405 = vmatpush1.msra.mxu0 0.0
        %406 = vmatprep.subr.mxu0 0.0
        %407 = vmatpush1.msra.mxu0 0.0
        %408 = vmatprep.subr.mxu0 0.0
        %409 = vmatpush1.msra.mxu0 0.0
        %410 = vmatprep.subr.mxu0 0.0
        %411 = vmatpush1.msra.mxu0 0.0
        %412 = vmatprep.subr.mxu0 0.0
        %413 = vmatpush1.msra.mxu0 0.0
        %414 = vmatprep.subr.mxu0 0.0
        %415 = vmatpush1.msra.mxu0 0.0
        %416 = vmatprep.subr.mxu0 0.0
        %417 = vmatpush1.msra.mxu0 0.0
        %418 = vmatprep.subr.mxu0 0.0
        %419 = vmatpush1.msra.mxu0 0.0
        %420 = vmatprep.subr.mxu0 0.0
        %421 = vmatpush1.msra.mxu0 0.0
        %422 = vmatprep.subr.mxu0 0.0
        %423 = vmatpush1.msra.mxu0 0.0
        %424 = vmatprep.mubr.f32.mxu0 0.0
        %425 = vmatmul.mubr.f32.gmra.mrb[0].mxu0 %v245
        %v426 = vpop.f32.mrb[0].mxu0
        %v427 = vadd.f32 0.0, %v426
        %v428 = vpop.f32.mrb[0].mxu0
        %429 = vmatprep.mubr.f32.mxu0 0.0
        %430 = vmatmul.mubr.f32.gmra.mrb[0].mxu0 %v246
        %v431 = vpop.f32.mrb[0].mxu0
        %v432 = vadd.f32 0.0, %v431
        %v433 = vpop.f32.mrb[0].mxu0
        %434 = vdwg.mxu0
        %s435 = scalar_lea.vmem [#allocation7], 256
        %v436 = vld [vmem:[%s435] sm:$0xff]
        %v437 = vld [vmem:[%s435 + $0x8] sm:$0xff]
        %v438 = vld [vmem:[%s435 + $0x10] sm:$0xff]
        %v439 = vld [vmem:[%s435 + $0x18] sm:$0xff]
        %v440 = vld [vmem:[%s435 + $0x20] sm:$0xff]
        %v441 = vld [vmem:[%s435 + $0x28] sm:$0xff]
        %v442 = vld [vmem:[%s435 + $0x30] sm:$0xff]
        %v443 = vld [vmem:[%s435 + $0x38] sm:$0xff]
        %v444 = vld [vmem:[%s435 + $0x40] sm:$0xff]
        %v445 = vld [vmem:[%s435 + $0x48] sm:$0xff]
        %v446 = vld [vmem:[%s435 + $0x50] sm:$0xff]
        %v447 = vld [vmem:[%s435 + $0x58] sm:$0xff]
        %v448 = vld [vmem:[%s435 + $0x60] sm:$0xff]
        %v449 = vld [vmem:[%s435 + $0x68] sm:$0xff]
        %v450 = vld [vmem:[%s435 + $0x70] sm:$0xff]
        %v451 = vld [vmem:[%s435 + $0x78] sm:$0xff]
        %452 = vmatprep.subr.mxu0 0.0
        %453 = vmatpush1.msra.mxu0 %v436
        %454 = vmatprep.subr.mxu0 0.0
        %455 = vmatpush1.msra.mxu0 %v437
        %456 = vmatprep.subr.mxu0 0.0
        %457 = vmatpush1.msra.mxu0 %v438
        %458 = vmatprep.subr.mxu0 0.0
        %459 = vmatpush1.msra.mxu0 %v439
        %460 = vmatprep.subr.mxu0 0.0
        %461 = vmatpush1.msra.mxu0 %v440
        %462 = vmatprep.subr.mxu0 0.0
        %463 = vmatpush1.msra.mxu0 %v441
        %464 = vmatprep.subr.mxu0 0.0
        %465 = vmatpush1.msra.mxu0 %v442
        %466 = vmatprep.subr.mxu0 0.0
        %467 = vmatpush1.msra.mxu0 %v443
        %468 = vmatprep.subr.mxu0 0.0
        %469 = vmatpush1.msra.mxu0 %v444
        %470 = vmatprep.subr.mxu0 0.0
        %471 = vmatpush1.msra.mxu0 %v445
        %472 = vmatprep.subr.mxu0 0.0
        %473 = vmatpush1.msra.mxu0 %v446
        %474 = vmatprep.subr.mxu0 0.0
        %475 = vmatpush1.msra.mxu0 %v447
        %476 = vmatprep.subr.mxu0 0.0
        %477 = vmatpush1.msra.mxu0 %v448
        %478 = vmatprep.subr.mxu0 0.0
        %479 = vmatpush1.msra.mxu0 %v449
        %480 = vmatprep.subr.mxu0 0.0
        %481 = vmatpush1.msra.mxu0 %v450
        %482 = vmatprep.subr.mxu0 0.0
        %483 = vmatpush1.msra.mxu0 %v451
        %484 = vmatprep.subr.mxu0 0.0
        %485 = vmatpush1.msra.mxu0 0.0
        %486 = vmatprep.subr.mxu0 0.0
        %487 = vmatpush1.msra.mxu0 0.0
        %488 = vmatprep.subr.mxu0 0.0
        %489 = vmatpush1.msra.mxu0 0.0
        %490 = vmatprep.subr.mxu0 0.0
        %491 = vmatpush1.msra.mxu0 0.0
        %492 = vmatprep.subr.mxu0 0.0
        %493 = vmatpush1.msra.mxu0 0.0
        %494 = vmatprep.subr.mxu0 0.0
        %495 = vmatpush1.msra.mxu0 0.0
        %496 = vmatprep.subr.mxu0 0.0
        %497 = vmatpush1.msra.mxu0 0.0
        %498 = vmatprep.subr.mxu0 0.0
        %499 = vmatpush1.msra.mxu0 0.0
        %500 = vmatprep.subr.mxu0 0.0
        %501 = vmatpush1.msra.mxu0 0.0
        %502 = vmatprep.subr.mxu0 0.0
        %503 = vmatpush1.msra.mxu0 0.0
        %504 = vmatprep.subr.mxu0 0.0
        %505 = vmatpush1.msra.mxu0 0.0
        %506 = vmatprep.subr.mxu0 0.0
        %507 = vmatpush1.msra.mxu0 0.0
        %508 = vmatprep.subr.mxu0 0.0
        %509 = vmatpush1.msra.mxu0 0.0
        %510 = vmatprep.subr.mxu0 0.0
        %511 = vmatpush1.msra.mxu0 0.0
        %512 = vmatprep.subr.mxu0 0.0
        %513 = vmatpush1.msra.mxu0 0.0
        %514 = vmatprep.subr.mxu0 0.0
        %515 = vmatpush1.msra.mxu0 0.0
        %516 = vmatprep.mubr.f32.mxu0 0.0
        %517 = vmatmul.mubr.f32.gmra.mrb[0].mxu0 %v245
        %v518 = vpop.f32.mrb[0].mxu0
        %v519 = vadd.f32 0.0, %v518
        %v520 = vpop.f32.mrb[0].mxu0
        %521 = vmatprep.mubr.f32.mxu0 0.0
        %522 = vmatmul.mubr.f32.gmra.mrb[0].mxu0 %v246
        %v523 = vpop.f32.mrb[0].mxu0
        %v524 = vadd.f32 0.0, %v523
        %v525 = vpop.f32.mrb[0].mxu0
        %526 = vdwg.mxu0
        %vm527 = vcmask 130048
        %v529 = vsel %vm527, %v247, 0
        %v532 = vsel %vm527, %v248, 0
        %534 = vmatprep.subr.mxu0 0.0
        %535 = vmatpush1.msra.mxu0 %v335
        %536 = vmatprep.subr.mxu0 0.0
        %537 = vmatpush1.msra.mxu0 %v340
        %538 = vmatprep.subr.mxu0 0.0
        %539 = vmatpush1.msra.mxu0 0.0
        %540 = vmatprep.subr.mxu0 0.0
        %541 = vmatpush1.msra.mxu0 0.0
        %542 = vmatprep.subr.mxu0 0.0
        %543 = vmatpush1.msra.mxu0 0.0
        %544 = vmatprep.subr.mxu0 0.0
        %545 = vmatpush1.msra.mxu0 0.0
        %546 = vmatprep.subr.mxu0 0.0
        %547 = vmatpush1.msra.mxu0 0.0
        %548 = vmatprep.subr.mxu0 0.0
        %549 = vmatpush1.msra.mxu0 0.0
        %550 = vmatprep.subr.mxu0 0.0
        %551 = vmatpush1.msra.mxu0 0.0
        %552 = vmatprep.subr.mxu0 0.0
        %553 = vmatpush1.msra.mxu0 0.0
        %554 = vmatprep.subr.mxu0 0.0
        %555 = vmatpush1.msra.mxu0 0.0
        %556 = vmatprep.subr.mxu0 0.0
        %557 = vmatpush1.msra.mxu0 0.0
        %558 = vmatprep.subr.mxu0 0.0
        %559 = vmatpush1.msra.mxu0 0.0
        %560 = vmatprep.subr.mxu0 0.0
        %561 = vmatpush1.msra.mxu0 0.0
        %562 = vmatprep.subr.mxu0 0.0
        %563 = vmatpush1.msra.mxu0 0.0
        %564 = vmatprep.subr.mxu0 0.0
        %565 = vmatpush1.msra.mxu0 0.0
        %566 = vmatprep.subr.mxu0 0.0
        %567 = vmatpush1.msra.mxu0 0.0
        %568 = vmatprep.subr.mxu0 0.0
        %569 = vmatpush1.msra.mxu0 0.0
        %570 = vmatprep.subr.mxu0 0.0
        %571 = vmatpush1.msra.mxu0 0.0
        %572 = vmatprep.subr.mxu0 0.0
        %573 = vmatpush1.msra.mxu0 0.0
        %574 = vmatprep.subr.mxu0 0.0
        %575 = vmatpush1.msra.mxu0 0.0
        %576 = vmatprep.subr.mxu0 0.0
        %577 = vmatpush1.msra.mxu0 0.0
        %578 = vmatprep.subr.mxu0 0.0
        %579 = vmatpush1.msra.mxu0 0.0
        %580 = vmatprep.subr.mxu0 0.0
        %581 = vmatpush1.msra.mxu0 0.0
        %582 = vmatprep.subr.mxu0 0.0
        %583 = vmatpush1.msra.mxu0 0.0
        %584 = vmatprep.subr.mxu0 0.0
        %585 = vmatpush1.msra.mxu0 0.0
        %586 = vmatprep.subr.mxu0 0.0
        %587 = vmatpush1.msra.mxu0 0.0
        %588 = vmatprep.subr.mxu0 0.0
        %589 = vmatpush1.msra.mxu0 0.0
        %590 = vmatprep.subr.mxu0 0.0
        %591 = vmatpush1.msra.mxu0 0.0
        %592 = vmatprep.subr.mxu0 0.0
        %593 = vmatpush1.msra.mxu0 0.0
        %594 = vmatprep.subr.mxu0 0.0
        %595 = vmatpush1.msra.mxu0 0.0
        %596 = vmatprep.subr.mxu0 0.0
        %597 = vmatpush1.msra.mxu0 0.0
        %598 = vmatprep.mubr.f32.mxu0 0.0
        %599 = vmatmul.mubr.f32.gmra.mrb[0].mxu0 %v529
        %v600 = vpop.f32.mrb[0].mxu0
        %v601 = vadd.f32 %v427, %v600
        %v602 = vpop.f32.mrb[0].mxu0
        %603 = vmatprep.mubr.f32.mxu0 0.0
        %604 = vmatmul.mubr.f32.gmra.mrb[0].mxu0 %v532
        %v605 = vpop.f32.mrb[0].mxu0
        %v606 = vadd.f32 %v432, %v605
        %v607 = vpop.f32.mrb[0].mxu0
        %608 = vdwg.mxu0
        %v610 = vsel %vm527, %v250, 0
        %v613 = vsel %vm527, %v251, 0
        %615 = vmatprep.subr.mxu0 0.0
        %616 = vmatpush1.msra.mxu0 %v519
        %617 = vmatprep.subr.mxu0 0.0
        %618 = vmatpush1.msra.mxu0 %v524
        %619 = vmatprep.subr.mxu0 0.0
        %620 = vmatpush1.msra.mxu0 0.0
        %621 = vmatprep.subr.mxu0 0.0
        %622 = vmatpush1.msra.mxu0 0.0
        %623 = vmatprep.subr.mxu0 0.0
        %624 = vmatpush1.msra.mxu0 0.0
        %625 = vmatprep.subr.mxu0 0.0
        %626 = vmatpush1.msra.mxu0 0.0
        %627 = vmatprep.subr.mxu0 0.0
        %628 = vmatpush1.msra.mxu0 0.0
        %629 = vmatprep.subr.mxu0 0.0
        %630 = vmatpush1.msra.mxu0 0.0
        %631 = vmatprep.subr.mxu0 0.0
        %632 = vmatpush1.msra.mxu0 0.0
        %633 = vmatprep.subr.mxu0 0.0
        %634 = vmatpush1.msra.mxu0 0.0
        %635 = vmatprep.subr.mxu0 0.0
        %636 = vmatpush1.msra.mxu0 0.0
        %637 = vmatprep.subr.mxu0 0.0
        %638 = vmatpush1.msra.mxu0 0.0
        %639 = vmatprep.subr.mxu0 0.0
        %640 = vmatpush1.msra.mxu0 0.0
        %641 = vmatprep.subr.mxu0 0.0
        %642 = vmatpush1.msra.mxu0 0.0
        %643 = vmatprep.subr.mxu0 0.0
        %644 = vmatpush1.msra.mxu0 0.0
        %645 = vmatprep.subr.mxu0 0.0
        %646 = vmatpush1.msra.mxu0 0.0
        %647 = vmatprep.subr.mxu0 0.0
        %648 = vmatpush1.msra.mxu0 0.0
        %649 = vmatprep.subr.mxu0 0.0
        %650 = vmatpush1.msra.mxu0 0.0
        %651 = vmatprep.subr.mxu0 0.0
        %652 = vmatpush1.msra.mxu0 0.0
        %653 = vmatprep.subr.mxu0 0.0
        %654 = vmatpush1.msra.mxu0 0.0
        %655 = vmatprep.subr.mxu0 0.0
        %656 = vmatpush1.msra.mxu0 0.0
        %657 = vmatprep.subr.mxu0 0.0
        %658 = vmatpush1.msra.mxu0 0.0
        %659 = vmatprep.subr.mxu0 0.0
        %660 = vmatpush1.msra.mxu0 0.0
        %661 = vmatprep.subr.mxu0 0.0
        %662 = vmatpush1.msra.mxu0 0.0
        %663 = vmatprep.subr.mxu0 0.0
        %664 = vmatpush1.msra.mxu0 0.0
        %665 = vmatprep.subr.mxu0 0.0
        %666 = vmatpush1.msra.mxu0 0.0
        %667 = vmatprep.subr.mxu0 0.0
        %668 = vmatpush1.msra.mxu0 0.0
        %669 = vmatprep.subr.mxu0 0.0
        %670 = vmatpush1.msra.mxu0 0.0
        %671 = vmatprep.subr.mxu0 0.0
        %672 = vmatpush1.msra.mxu0 0.0
        %673 = vmatprep.subr.mxu0 0.0
        %674 = vmatpush1.msra.mxu0 0.0
        %675 = vmatprep.subr.mxu0 0.0
        %676 = vmatpush1.msra.mxu0 0.0
        %677 = vmatprep.subr.mxu0 0.0
        %678 = vmatpush1.msra.mxu0 0.0
        %679 = vmatprep.mubr.f32.mxu0 0.0
        %680 = vmatmul.mubr.f32.gmra.mrb[0].mxu0 %v610
        %v681 = vpop.f32.mrb[0].mxu0
        %v682 = vadd.f32 0.0, %v681
        %v683 = vpop.f32.mrb[0].mxu0
        %684 = vmatprep.mubr.f32.mxu0 0.0
        %685 = vmatmul.mubr.f32.gmra.mrb[0].mxu0 %v613
        %v686 = vpop.f32.mrb[0].mxu0
        %v687 = vadd.f32 0.0, %v686
        %v688 = vpop.f32.mrb[0].mxu0
        %689 = vdwg.mxu0
        %v690 = vadd.f32 %v601, %v682
        %v691 = vadd.f32 %v606, %v687
        %v692 = vld [vmem:[%s3] sm:$0x1]
        %v694 = vlaneseq
        %v695 = vshrl.u32 %v694, 7
        %v696 = vsub.s32 0, %v695
        %v697 = vrot.slane %v692, %v696
        %v699 = vadd.f32 %v690, %v697
        %v700 = vadd.f32 %v691, %v697
        %s701 = scalar_lea.vmem [#allocation7], 384
        %v702 = vld [vmem:[%s701] sm:$0xff]
        %v703 = vld [vmem:[%s701 + $0x8] sm:$0xff]
        %v704 = vld [vmem:[%s701 + $0x10] sm:$0xff]
        %v705 = vld [vmem:[%s701 + $0x18] sm:$0xff]
        %v706 = vld [vmem:[%s701 + $0x20] sm:$0xff]
        %v707 = vld [vmem:[%s701 + $0x28] sm:$0xff]
        %v708 = vld [vmem:[%s701 + $0x30] sm:$0xff]
        %v709 = vld [vmem:[%s701 + $0x38] sm:$0xff]
        %v710 = vld [vmem:[%s701 + $0x40] sm:$0xff]
        %v711 = vld [vmem:[%s701 + $0x48] sm:$0xff]
        %v712 = vld [vmem:[%s701 + $0x50] sm:$0xff]
        %v713 = vld [vmem:[%s701 + $0x58] sm:$0xff]
        %v714 = vld [vmem:[%s701 + $0x60] sm:$0xff]
        %v715 = vld [vmem:[%s701 + $0x68] sm:$0xff]
        %v716 = vld [vmem:[%s701 + $0x70] sm:$0xff]
        %v717 = vld [vmem:[%s701 + $0x78] sm:$0xff]
        %718 = vmatprep.subr.mxu0 0.0
        %719 = vmatpush1.msra.mxu0 %v702
        %720 = vmatprep.subr.mxu0 0.0
        %721 = vmatpush1.msra.mxu0 %v703
        %722 = vmatprep.subr.mxu0 0.0
        %723 = vmatpush1.msra.mxu0 %v704
        %724 = vmatprep.subr.mxu0 0.0
        %725 = vmatpush1.msra.mxu0 %v705
        %726 = vmatprep.subr.mxu0 0.0
        %727 = vmatpush1.msra.mxu0 %v706
        %728 = vmatprep.subr.mxu0 0.0
        %729 = vmatpush1.msra.mxu0 %v707
        %730 = vmatprep.subr.mxu0 0.0
        %731 = vmatpush1.msra.mxu0 %v708
        %732 = vmatprep.subr.mxu0 0.0
        %733 = vmatpush1.msra.mxu0 %v709
        %734 = vmatprep.subr.mxu0 0.0
        %735 = vmatpush1.msra.mxu0 %v710
        %736 = vmatprep.subr.mxu0 0.0
        %737 = vmatpush1.msra.mxu0 %v711
        %738 = vmatprep.subr.mxu0 0.0
        %739 = vmatpush1.msra.mxu0 %v712
        %740 = vmatprep.subr.mxu0 0.0
        %741 = vmatpush1.msra.mxu0 %v713
        %742 = vmatprep.subr.mxu0 0.0
        %743 = vmatpush1.msra.mxu0 %v714
        %744 = vmatprep.subr.mxu0 0.0
        %745 = vmatpush1.msra.mxu0 %v715
        %746 = vmatprep.subr.mxu0 0.0
        %747 = vmatpush1.msra.mxu0 %v716
        %748 = vmatprep.subr.mxu0 0.0
        %749 = vmatpush1.msra.mxu0 %v717
        %750 = vmatprep.subr.mxu0 0.0
        %751 = vmatpush1.msra.mxu0 0.0
        %752 = vmatprep.subr.mxu0 0.0
        %753 = vmatpush1.msra.mxu0 0.0
        %754 = vmatprep.subr.mxu0 0.0
        %755 = vmatpush1.msra.mxu0 0.0
        %756 = vmatprep.subr.mxu0 0.0
        %757 = vmatpush1.msra.mxu0 0.0
        %758 = vmatprep.subr.mxu0 0.0
        %759 = vmatpush1.msra.mxu0 0.0
        %760 = vmatprep.subr.mxu0 0.0
        %761 = vmatpush1.msra.mxu0 0.0
        %762 = vmatprep.subr.mxu0 0.0
        %763 = vmatpush1.msra.mxu0 0.0
        %764 = vmatprep.subr.mxu0 0.0
        %765 = vmatpush1.msra.mxu0 0.0
        %766 = vmatprep.subr.mxu0 0.0
        %767 = vmatpush1.msra.mxu0 0.0
        %768 = vmatprep.subr.mxu0 0.0
        %769 = vmatpush1.msra.mxu0 0.0
        %770 = vmatprep.subr.mxu0 0.0
        %771 = vmatpush1.msra.mxu0 0.0
        %772 = vmatprep.subr.mxu0 0.0
        %773 = vmatpush1.msra.mxu0 0.0
        %774 = vmatprep.subr.mxu0 0.0
        %775 = vmatpush1.msra.mxu0 0.0
        %776 = vmatprep.subr.mxu0 0.0
        %777 = vmatpush1.msra.mxu0 0.0
        %778 = vmatprep.subr.mxu0 0.0
        %779 = vmatpush1.msra.mxu0 0.0
        %780 = vmatprep.subr.mxu0 0.0
        %781 = vmatpush1.msra.mxu0 0.0
        %782 = vmatprep.mubr.f32.mxu0 0.0
        %783 = vmatmul.mubr.f32.gmra.mrb[0].mxu0 %v699
        %v784 = vpop.f32.mrb[0].mxu0
        %v785 = vadd.f32 0.0, %v784
        %v786 = vpop.f32.mrb[0].mxu0
        %787 = vmatprep.mubr.f32.mxu0 0.0
        %788 = vmatmul.mubr.f32.gmra.mrb[0].mxu0 %v700
        %v789 = vpop.f32.mrb[0].mxu0
        %v790 = vadd.f32 0.0, %v789
        %v791 = vpop.f32.mrb[0].mxu0
        %792 = vdwg.mxu0
        %s793 = scalar_lea.vmem [#allocation7], 512
        %v794 = vld [vmem:[%s793] sm:$0xff]
        %v795 = vld [vmem:[%s793 + $0x8] sm:$0xff]
        %v796 = vld [vmem:[%s793 + $0x10] sm:$0xff]
        %v797 = vld [vmem:[%s793 + $0x18] sm:$0xff]
        %v798 = vld [vmem:[%s793 + $0x20] sm:$0xff]
        %v799 = vld [vmem:[%s793 + $0x28] sm:$0xff]
        %v800 = vld [vmem:[%s793 + $0x30] sm:$0xff]
        %v801 = vld [vmem:[%s793 + $0x38] sm:$0xff]
        %v802 = vld [vmem:[%s793 + $0x40] sm:$0xff]
        %v803 = vld [vmem:[%s793 + $0x48] sm:$0xff]
        %v804 = vld [vmem:[%s793 + $0x50] sm:$0xff]
        %v805 = vld [vmem:[%s793 + $0x58] sm:$0xff]
        %v806 = vld [vmem:[%s793 + $0x60] sm:$0xff]
        %v807 = vld [vmem:[%s793 + $0x68] sm:$0xff]
        %v808 = vld [vmem:[%s793 + $0x70] sm:$0xff]
        %v809 = vld [vmem:[%s793 + $0x78] sm:$0xff]
        %810 = vmatprep.subr.mxu0 0.0
        %811 = vmatpush1.msra.mxu0 %v794
        %812 = vmatprep.subr.mxu0 0.0
        %813 = vmatpush1.msra.mxu0 %v795
        %814 = vmatprep.subr.mxu0 0.0
        %815 = vmatpush1.msra.mxu0 %v796
        %816 = vmatprep.subr.mxu0 0.0
        %817 = vmatpush1.msra.mxu0 %v797
        %818 = vmatprep.subr.mxu0 0.0
        %819 = vmatpush1.msra.mxu0 %v798
        %820 = vmatprep.subr.mxu0 0.0
        %821 = vmatpush1.msra.mxu0 %v799
        %822 = vmatprep.subr.mxu0 0.0
        %823 = vmatpush1.msra.mxu0 %v800
        %824 = vmatprep.subr.mxu0 0.0
        %825 = vmatpush1.msra.mxu0 %v801
        %826 = vmatprep.subr.mxu0 0.0
        %827 = vmatpush1.msra.mxu0 %v802
        %828 = vmatprep.subr.mxu0 0.0
        %829 = vmatpush1.msra.mxu0 %v803
        %830 = vmatprep.subr.mxu0 0.0
        %831 = vmatpush1.msra.mxu0 %v804
        %832 = vmatprep.subr.mxu0 0.0
        %833 = vmatpush1.msra.mxu0 %v805
        %834 = vmatprep.subr.mxu0 0.0
        %835 = vmatpush1.msra.mxu0 %v806
        %836 = vmatprep.subr.mxu0 0.0
        %837 = vmatpush1.msra.mxu0 %v807
        %838 = vmatprep.subr.mxu0 0.0
        %839 = vmatpush1.msra.mxu0 %v808
        %840 = vmatprep.subr.mxu0 0.0
        %841 = vmatpush1.msra.mxu0 %v809
        %842 = vmatprep.subr.mxu0 0.0
        %843 = vmatpush1.msra.mxu0 0.0
        %844 = vmatprep.subr.mxu0 0.0
        %845 = vmatpush1.msra.mxu0 0.0
        %846 = vmatprep.subr.mxu0 0.0
        %847 = vmatpush1.msra.mxu0 0.0
        %848 = vmatprep.subr.mxu0 0.0
        %849 = vmatpush1.msra.mxu0 0.0
        %850 = vmatprep.subr.mxu0 0.0
        %851 = vmatpush1.msra.mxu0 0.0
        %852 = vmatprep.subr.mxu0 0.0
        %853 = vmatpush1.msra.mxu0 0.0
        %854 = vmatprep.subr.mxu0 0.0
        %855 = vmatpush1.msra.mxu0 0.0
        %856 = vmatprep.subr.mxu0 0.0
        %857 = vmatpush1.msra.mxu0 0.0
        %858 = vmatprep.subr.mxu0 0.0
        %859 = vmatpush1.msra.mxu0 0.0
        %860 = vmatprep.subr.mxu0 0.0
        %861 = vmatpush1.msra.mxu0 0.0
        %862 = vmatprep.subr.mxu0 0.0
        %863 = vmatpush1.msra.mxu0 0.0
        %864 = vmatprep.subr.mxu0 0.0
        %865 = vmatpush1.msra.mxu0 0.0
        %866 = vmatprep.subr.mxu0 0.0
        %867 = vmatpush1.msra.mxu0 0.0
        %868 = vmatprep.subr.mxu0 0.0
        %869 = vmatpush1.msra.mxu0 0.0
        %870 = vmatprep.subr.mxu0 0.0
        %871 = vmatpush1.msra.mxu0 0.0
        %872 = vmatprep.subr.mxu0 0.0
        %873 = vmatpush1.msra.mxu0 0.0
        %874 = vmatprep.mubr.f32.mxu0 0.0
        %875 = vmatmul.mubr.f32.gmra.mrb[0].mxu0 %v699
        %v876 = vpop.f32.mrb[0].mxu0
        %v877 = vadd.f32 0.0, %v876
        %v878 = vpop.f32.mrb[0].mxu0
        %879 = vmatprep.mubr.f32.mxu0 0.0
        %880 = vmatmul.mubr.f32.gmra.mrb[0].mxu0 %v700
        %v881 = vpop.f32.mrb[0].mxu0
        %v882 = vadd.f32 0.0, %v881
        %v883 = vpop.f32.mrb[0].mxu0
        %884 = vdwg.mxu0
        %s885 = scalar_lea.vmem [#allocation7], 640
        %v886 = vld [vmem:[%s885] sm:$0xff]
        %v887 = vld [vmem:[%s885 + $0x8] sm:$0xff]
        %v888 = vld [vmem:[%s885 + $0x10] sm:$0xff]
        %v889 = vld [vmem:[%s885 + $0x18] sm:$0xff]
        %v890 = vld [vmem:[%s885 + $0x20] sm:$0xff]
        %v891 = vld [vmem:[%s885 + $0x28] sm:$0xff]
        %v892 = vld [vmem:[%s885 + $0x30] sm:$0xff]
        %v893 = vld [vmem:[%s885 + $0x38] sm:$0xff]
        %v894 = vld [vmem:[%s885 + $0x40] sm:$0xff]
        %v895 = vld [vmem:[%s885 + $0x48] sm:$0xff]
        %v896 = vld [vmem:[%s885 + $0x50] sm:$0xff]
        %v897 = vld [vmem:[%s885 + $0x58] sm:$0xff]
        %v898 = vld [vmem:[%s885 + $0x60] sm:$0xff]
        %v899 = vld [vmem:[%s885 + $0x68] sm:$0xff]
        %v900 = vld [vmem:[%s885 + $0x70] sm:$0xff]
        %v901 = vld [vmem:[%s885 + $0x78] sm:$0xff]
        %902 = vmatprep.subr.mxu0 0.0
        %903 = vmatpush1.msra.mxu0 %v886
        %904 = vmatprep.subr.mxu0 0.0
        %905 = vmatpush1.msra.mxu0 %v887
        %906 = vmatprep.subr.mxu0 0.0
        %907 = vmatpush1.msra.mxu0 %v888
        %908 = vmatprep.subr.mxu0 0.0
        %909 = vmatpush1.msra.mxu0 %v889
        %910 = vmatprep.subr.mxu0 0.0
        %911 = vmatpush1.msra.mxu0 %v890
        %912 = vmatprep.subr.mxu0 0.0
        %913 = vmatpush1.msra.mxu0 %v891
        %914 = vmatprep.subr.mxu0 0.0
        %915 = vmatpush1.msra.mxu0 %v892
        %916 = vmatprep.subr.mxu0 0.0
        %917 = vmatpush1.msra.mxu0 %v893
        %918 = vmatprep.subr.mxu0 0.0
        %919 = vmatpush1.msra.mxu0 %v894
        %920 = vmatprep.subr.mxu0 0.0
        %921 = vmatpush1.msra.mxu0 %v895
        %922 = vmatprep.subr.mxu0 0.0
        %923 = vmatpush1.msra.mxu0 %v896
        %924 = vmatprep.subr.mxu0 0.0
        %925 = vmatpush1.msra.mxu0 %v897
        %926 = vmatprep.subr.mxu0 0.0
        %927 = vmatpush1.msra.mxu0 %v898
        %928 = vmatprep.subr.mxu0 0.0
        %929 = vmatpush1.msra.mxu0 %v899
        %930 = vmatprep.subr.mxu0 0.0
        %931 = vmatpush1.msra.mxu0 %v900
        %932 = vmatprep.subr.mxu0 0.0
        %933 = vmatpush1.msra.mxu0 %v901
        %934 = vmatprep.subr.mxu0 0.0
        %935 = vmatpush1.msra.mxu0 0.0
        %936 = vmatprep.subr.mxu0 0.0
        %937 = vmatpush1.msra.mxu0 0.0
        %938 = vmatprep.subr.mxu0 0.0
        %939 = vmatpush1.msra.mxu0 0.0
        %940 = vmatprep.subr.mxu0 0.0
        %941 = vmatpush1.msra.mxu0 0.0
        %942 = vmatprep.subr.mxu0 0.0
        %943 = vmatpush1.msra.mxu0 0.0
        %944 = vmatprep.subr.mxu0 0.0
        %945 = vmatpush1.msra.mxu0 0.0
        %946 = vmatprep.subr.mxu0 0.0
        %947 = vmatpush1.msra.mxu0 0.0
        %948 = vmatprep.subr.mxu0 0.0
        %949 = vmatpush1.msra.mxu0 0.0
        %950 = vmatprep.subr.mxu0 0.0
        %951 = vmatpush1.msra.mxu0 0.0
        %952 = vmatprep.subr.mxu0 0.0
        %953 = vmatpush1.msra.mxu0 0.0
        %954 = vmatprep.subr.mxu0 0.0
        %955 = vmatpush1.msra.mxu0 0.0
        %956 = vmatprep.subr.mxu0 0.0
        %957 = vmatpush1.msra.mxu0 0.0
        %958 = vmatprep.subr.mxu0 0.0
        %959 = vmatpush1.msra.mxu0 0.0
        %960 = vmatprep.subr.mxu0 0.0
        %961 = vmatpush1.msra.mxu0 0.0
        %962 = vmatprep.subr.mxu0 0.0
        %963 = vmatpush1.msra.mxu0 0.0
        %964 = vmatprep.subr.mxu0 0.0
        %965 = vmatpush1.msra.mxu0 0.0
        %966 = vmatprep.mubr.f32.mxu0 0.0
        %967 = vmatmul.mubr.f32.gmra.mrb[0].mxu0 %v699
        %v968 = vpop.f32.mrb[0].mxu0
        %v969 = vadd.f32 0.0, %v968
        %v970 = vpop.f32.mrb[0].mxu0
        %971 = vmatprep.mubr.f32.mxu0 0.0
        %972 = vmatmul.mubr.f32.gmra.mrb[0].mxu0 %v700
        %v973 = vpop.f32.mrb[0].mxu0
        %v974 = vadd.f32 0.0, %v973
        %v975 = vpop.f32.mrb[0].mxu0
        %976 = vdwg.mxu0
        %977 = vmatprep.subr.mxu0 0.0
        %978 = vmatpush1.msra.mxu0 %v785
        %979 = vmatprep.subr.mxu0 0.0
        %980 = vmatpush1.msra.mxu0 %v790
        %981 = vmatprep.subr.mxu0 0.0
        %982 = vmatpush1.msra.mxu0 0.0
        %983 = vmatprep.subr.mxu0 0.0
        %984 = vmatpush1.msra.mxu0 0.0
        %985 = vmatprep.subr.mxu0 0.0
        %986 = vmatpush1.msra.mxu0 0.0
        %987 = vmatprep.subr.mxu0 0.0
        %988 = vmatpush1.msra.mxu0 0.0
        %989 = vmatprep.subr.mxu0 0.0
        %990 = vmatpush1.msra.mxu0 0.0
        %991 = vmatprep.subr.mxu0 0.0
        %992 = vmatpush1.msra.mxu0 0.0
        %993 = vmatprep.subr.mxu0 0.0
        %994 = vmatpush1.msra.mxu0 0.0
        %995 = vmatprep.subr.mxu0 0.0
        %996 = vmatpush1.msra.mxu0 0.0
        %997 = vmatprep.subr.mxu0 0.0
        %998 = vmatpush1.msra.mxu0 0.0
        %999 = vmatprep.subr.mxu0 0.0
        %1000 = vmatpush1.msra.mxu0 0.0
        %1001 = vmatprep.subr.mxu0 0.0
        %1002 = vmatpush1.msra.mxu0 0.0
        %1003 = vmatprep.subr.mxu0 0.0
        %1004 = vmatpush1.msra.mxu0 0.0
        %1005 = vmatprep.subr.mxu0 0.0
        %1006 = vmatpush1.msra.mxu0 0.0
        %1007 = vmatprep.subr.mxu0 0.0
        %1008 = vmatpush1.msra.mxu0 0.0
        %1009 = vmatprep.subr.mxu0 0.0
        %1010 = vmatpush1.msra.mxu0 0.0
        %1011 = vmatprep.subr.mxu0 0.0
        %1012 = vmatpush1.msra.mxu0 0.0
        %1013 = vmatprep.subr.mxu0 0.0
        %1014 = vmatpush1.msra.mxu0 0.0
        %1015 = vmatprep.subr.mxu0 0.0
        %1016 = vmatpush1.msra.mxu0 0.0
        %1017 = vmatprep.subr.mxu0 0.0
        %1018 = vmatpush1.msra.mxu0 0.0
        %1019 = vmatprep.subr.mxu0 0.0
        %1020 = vmatpush1.msra.mxu0 0.0
        %1021 = vmatprep.subr.mxu0 0.0
        %1022 = vmatpush1.msra.mxu0 0.0
        %1023 = vmatprep.subr.mxu0 0.0
        %1024 = vmatpush1.msra.mxu0 0.0
        %1025 = vmatprep.subr.mxu0 0.0
        %1026 = vmatpush1.msra.mxu0 0.0
        %1027 = vmatprep.subr.mxu0 0.0
        %1028 = vmatpush1.msra.mxu0 0.0
        %1029 = vmatprep.subr.mxu0 0.0
        %1030 = vmatpush1.msra.mxu0 0.0
        %1031 = vmatprep.subr.mxu0 0.0
        %1032 = vmatpush1.msra.mxu0 0.0
        %1033 = vmatprep.subr.mxu0 0.0
        %1034 = vmatpush1.msra.mxu0 0.0
        %1035 = vmatprep.subr.mxu0 0.0
        %1036 = vmatpush1.msra.mxu0 0.0
        %1037 = vmatprep.subr.mxu0 0.0
        %1038 = vmatpush1.msra.mxu0 0.0
        %1039 = vmatprep.subr.mxu0 0.0
        %1040 = vmatpush1.msra.mxu0 0.0
        %1041 = vmatprep.mubr.f32.mxu0 0.0
        %1042 = vmatmul.mubr.f32.gmra.mrb[0].mxu0 %v529
        %v1043 = vpop.f32.mrb[0].mxu0
        %v1044 = vadd.f32 %v877, %v1043
        %v1045 = vpop.f32.mrb[0].mxu0
        %1046 = vmatprep.mubr.f32.mxu0 0.0
        %1047 = vmatmul.mubr.f32.gmra.mrb[0].mxu0 %v532
        %v1048 = vpop.f32.mrb[0].mxu0
        %v1049 = vadd.f32 %v882, %v1048
        %v1050 = vpop.f32.mrb[0].mxu0
        %1051 = vdwg.mxu0
        %1052 = vmatprep.subr.mxu0 0.0
        %1053 = vmatpush1.msra.mxu0 %v969
        %1054 = vmatprep.subr.mxu0 0.0
        %1055 = vmatpush1.msra.mxu0 %v974
        %1056 = vmatprep.subr.mxu0 0.0
        %1057 = vmatpush1.msra.mxu0 0.0
        %1058 = vmatprep.subr.mxu0 0.0
        %1059 = vmatpush1.msra.mxu0 0.0
        %1060 = vmatprep.subr.mxu0 0.0
        %1061 = vmatpush1.msra.mxu0 0.0
        %1062 = vmatprep.subr.mxu0 0.0
        %1063 = vmatpush1.msra.mxu0 0.0
        %1064 = vmatprep.subr.mxu0 0.0
        %1065 = vmatpush1.msra.mxu0 0.0
        %1066 = vmatprep.subr.mxu0 0.0
        %1067 = vmatpush1.msra.mxu0 0.0
        %1068 = vmatprep.subr.mxu0 0.0
        %1069 = vmatpush1.msra.mxu0 0.0
        %1070 = vmatprep.subr.mxu0 0.0
        %1071 = vmatpush1.msra.mxu0 0.0
        %1072 = vmatprep.subr.mxu0 0.0
        %1073 = vmatpush1.msra.mxu0 0.0
        %1074 = vmatprep.subr.mxu0 0.0
        %1075 = vmatpush1.msra.mxu0 0.0
        %1076 = vmatprep.subr.mxu0 0.0
        %1077 = vmatpush1.msra.mxu0 0.0
        %1078 = vmatprep.subr.mxu0 0.0
        %1079 = vmatpush1.msra.mxu0 0.0
        %1080 = vmatprep.subr.mxu0 0.0
        %1081 = vmatpush1.msra.mxu0 0.0
        %1082 = vmatprep.subr.mxu0 0.0
        %1083 = vmatpush1.msra.mxu0 0.0
        %1084 = vmatprep.subr.mxu0 0.0
        %1085 = vmatpush1.msra.mxu0 0.0
        %1086 = vmatprep.subr.mxu0 0.0
        %1087 = vmatpush1.msra.mxu0 0.0
        %1088 = vmatprep.subr.mxu0 0.0
        %1089 = vmatpush1.msra.mxu0 0.0
        %1090 = vmatprep.subr.mxu0 0.0
        %1091 = vmatpush1.msra.mxu0 0.0
        %1092 = vmatprep.subr.mxu0 0.0
        %1093 = vmatpush1.msra.mxu0 0.0
        %1094 = vmatprep.subr.mxu0 0.0
        %1095 = vmatpush1.msra.mxu0 0.0
        %1096 = vmatprep.subr.mxu0 0.0
        %1097 = vmatpush1.msra.mxu0 0.0
        %1098 = vmatprep.subr.mxu0 0.0
        %1099 = vmatpush1.msra.mxu0 0.0
        %1100 = vmatprep.subr.mxu0 0.0
        %1101 = vmatpush1.msra.mxu0 0.0
        %1102 = vmatprep.subr.mxu0 0.0
        %1103 = vmatpush1.msra.mxu0 0.0
        %1104 = vmatprep.subr.mxu0 0.0
        %1105 = vmatpush1.msra.mxu0 0.0
        %1106 = vmatprep.subr.mxu0 0.0
        %1107 = vmatpush1.msra.mxu0 0.0
        %1108 = vmatprep.subr.mxu0 0.0
        %1109 = vmatpush1.msra.mxu0 0.0
        %1110 = vmatprep.subr.mxu0 0.0
        %1111 = vmatpush1.msra.mxu0 0.0
        %1112 = vmatprep.subr.mxu0 0.0
        %1113 = vmatpush1.msra.mxu0 0.0
        %1114 = vmatprep.subr.mxu0 0.0
        %1115 = vmatpush1.msra.mxu0 0.0
        %1116 = vmatprep.mubr.f32.mxu0 0.0
        %1117 = vmatmul.mubr.f32.gmra.mrb[0].mxu0 %v610
        %v1118 = vpop.f32.mrb[0].mxu0
        %v1119 = vadd.f32 0.0, %v1118
        %v1120 = vpop.f32.mrb[0].mxu0
        %1121 = vmatprep.mubr.f32.mxu0 0.0
        %1122 = vmatmul.mubr.f32.gmra.mrb[0].mxu0 %v613
        %v1123 = vpop.f32.mrb[0].mxu0
        %v1124 = vadd.f32 0.0, %v1123
        %v1125 = vpop.f32.mrb[0].mxu0
        %1126 = vdwg.mxu0
        %v1127 = vadd.f32 %v1044, %v1119
        %v1128 = vadd.f32 %v1049, %v1124
        %s1129 = scalar_lea.vmem %s3, 1
        %v1130 = vld [vmem:[%s1129] sm:$0x1]
        %v1132 = vlaneseq
        %v1133 = vshrl.u32 %v1132, 7
        %v1134 = vsub.s32 0, %v1133
        %v1135 = vrot.slane %v1130, %v1134
        %v1137 = vadd.f32 %v1127, %v1135
        %v1138 = vadd.f32 %v1128, %v1135
        %v1139 = vmax.f32 %v1137, 0.0
        %v1140 = vmax.f32 %v1138, 0.0
        %s1141 = scalar_lea.vmem [#allocation7], 768
        %v1142 = vld [vmem:[%s1141] sm:$0xff]
        %v1143 = vld [vmem:[%s1141 + $0x8] sm:$0xff]
        %v1144 = vld [vmem:[%s1141 + $0x10] sm:$0xff]
        %v1145 = vld [vmem:[%s1141 + $0x18] sm:$0xff]
        %v1146 = vld [vmem:[%s1141 + $0x20] sm:$0xff]
        %v1147 = vld [vmem:[%s1141 + $0x28] sm:$0xff]
        %v1148 = vld [vmem:[%s1141 + $0x30] sm:$0xff]
        %v1149 = vld [vmem:[%s1141 + $0x38] sm:$0xff]
        %v1150 = vld [vmem:[%s1141 + $0x40] sm:$0xff]
        %v1151 = vld [vmem:[%s1141 + $0x48] sm:$0xff]
        %v1152 = vld [vmem:[%s1141 + $0x50] sm:$0xff]
        %v1153 = vld [vmem:[%s1141 + $0x58] sm:$0xff]
        %v1154 = vld [vmem:[%s1141 + $0x60] sm:$0xff]
        %v1155 = vld [vmem:[%s1141 + $0x68] sm:$0xff]
        %v1156 = vld [vmem:[%s1141 + $0x70] sm:$0xff]
        %v1157 = vld [vmem:[%s1141 + $0x78] sm:$0xff]
        %1158 = vmatprep.subr.mxu0 0.0
        %1159 = vmatpush1.msra.mxu0 %v1142
        %1160 = vmatprep.subr.mxu0 0.0
        %1161 = vmatpush1.msra.mxu0 %v1143
        %1162 = vmatprep.subr.mxu0 0.0
        %1163 = vmatpush1.msra.mxu0 %v1144
        %1164 = vmatprep.subr.mxu0 0.0
        %1165 = vmatpush1.msra.mxu0 %v1145
        %1166 = vmatprep.subr.mxu0 0.0
        %1167 = vmatpush1.msra.mxu0 %v1146
        %1168 = vmatprep.subr.mxu0 0.0
        %1169 = vmatpush1.msra.mxu0 %v1147
        %1170 = vmatprep.subr.mxu0 0.0
        %1171 = vmatpush1.msra.mxu0 %v1148
        %1172 = vmatprep.subr.mxu0 0.0
        %1173 = vmatpush1.msra.mxu0 %v1149
        %1174 = vmatprep.subr.mxu0 0.0
        %1175 = vmatpush1.msra.mxu0 %v1150
        %1176 = vmatprep.subr.mxu0 0.0
        %1177 = vmatpush1.msra.mxu0 %v1151
        %1178 = vmatprep.subr.mxu0 0.0
        %1179 = vmatpush1.msra.mxu0 %v1152
        %1180 = vmatprep.subr.mxu0 0.0
        %1181 = vmatpush1.msra.mxu0 %v1153
        %1182 = vmatprep.subr.mxu0 0.0
        %1183 = vmatpush1.msra.mxu0 %v1154
        %1184 = vmatprep.subr.mxu0 0.0
        %1185 = vmatpush1.msra.mxu0 %v1155
        %1186 = vmatprep.subr.mxu0 0.0
        %1187 = vmatpush1.msra.mxu0 %v1156
        %1188 = vmatprep.subr.mxu0 0.0
        %1189 = vmatpush1.msra.mxu0 %v1157
        %1190 = vmatprep.subr.mxu0 0.0
        %1191 = vmatpush1.msra.mxu0 0.0
        %1192 = vmatprep.subr.mxu0 0.0
        %1193 = vmatpush1.msra.mxu0 0.0
        %1194 = vmatprep.subr.mxu0 0.0
        %1195 = vmatpush1.msra.mxu0 0.0
        %1196 = vmatprep.subr.mxu0 0.0
        %1197 = vmatpush1.msra.mxu0 0.0
        %1198 = vmatprep.subr.mxu0 0.0
        %1199 = vmatpush1.msra.mxu0 0.0
        %1200 = vmatprep.subr.mxu0 0.0
        %1201 = vmatpush1.msra.mxu0 0.0
        %1202 = vmatprep.subr.mxu0 0.0
        %1203 = vmatpush1.msra.mxu0 0.0
        %1204 = vmatprep.subr.mxu0 0.0
        %1205 = vmatpush1.msra.mxu0 0.0
        %1206 = vmatprep.subr.mxu0 0.0
        %1207 = vmatpush1.msra.mxu0 0.0
        %1208 = vmatprep.subr.mxu0 0.0
        %1209 = vmatpush1.msra.mxu0 0.0
        %1210 = vmatprep.subr.mxu0 0.0
        %1211 = vmatpush1.msra.mxu0 0.0
        %1212 = vmatprep.subr.mxu0 0.0
        %1213 = vmatpush1.msra.mxu0 0.0
        %1214 = vmatprep.subr.mxu0 0.0
        %1215 = vmatpush1.msra.mxu0 0.0
        %1216 = vmatprep.subr.mxu0 0.0
        %1217 = vmatpush1.msra.mxu0 0.0
        %1218 = vmatprep.subr.mxu0 0.0
        %1219 = vmatpush1.msra.mxu0 0.0
        %1220 = vmatprep.subr.mxu0 0.0
        %1221 = vmatpush1.msra.mxu0 0.0
        %1222 = vmatprep.mubr.f32.mxu0 0.0
        %1223 = vmatmul.mubr.f32.gmra.mrb[0].mxu0 %v1139
        %v1224 = vpop.f32.mrb[0].mxu0
        %v1225 = vadd.f32 0.0, %v1224
        %v1226 = vpop.f32.mrb[0].mxu0
        %1227 = vmatprep.mubr.f32.mxu0 0.0
        %1228 = vmatmul.mubr.f32.gmra.mrb[0].mxu0 %v1140
        %v1229 = vpop.f32.mrb[0].mxu0
        %v1230 = vadd.f32 0.0, %v1229
        %v1231 = vpop.f32.mrb[0].mxu0
        %1232 = vdwg.mxu0
        %s1233 = scalar_lea.vmem [#allocation7], 896
        %v1234 = vld [vmem:[%s1233] sm:$0xff]
        %v1235 = vld [vmem:[%s1233 + $0x8] sm:$0xff]
        %v1236 = vld [vmem:[%s1233 + $0x10] sm:$0xff]
        %v1237 = vld [vmem:[%s1233 + $0x18] sm:$0xff]
        %v1238 = vld [vmem:[%s1233 + $0x20] sm:$0xff]
        %v1239 = vld [vmem:[%s1233 + $0x28] sm:$0xff]
        %v1240 = vld [vmem:[%s1233 + $0x30] sm:$0xff]
        %v1241 = vld [vmem:[%s1233 + $0x38] sm:$0xff]
        %v1242 = vld [vmem:[%s1233 + $0x40] sm:$0xff]
        %v1243 = vld [vmem:[%s1233 + $0x48] sm:$0xff]
        %v1244 = vld [vmem:[%s1233 + $0x50] sm:$0xff]
        %v1245 = vld [vmem:[%s1233 + $0x58] sm:$0xff]
        %v1246 = vld [vmem:[%s1233 + $0x60] sm:$0xff]
        %v1247 = vld [vmem:[%s1233 + $0x68] sm:$0xff]
        %v1248 = vld [vmem:[%s1233 + $0x70] sm:$0xff]
        %v1249 = vld [vmem:[%s1233 + $0x78] sm:$0xff]
        %1250 = vmatprep.subr.mxu0 0.0
        %1251 = vmatpush1.msra.mxu0 %v1234
        %1252 = vmatprep.subr.mxu0 0.0
        %1253 = vmatpush1.msra.mxu0 %v1235
        %1254 = vmatprep.subr.mxu0 0.0
        %1255 = vmatpush1.msra.mxu0 %v1236
        %1256 = vmatprep.subr.mxu0 0.0
        %1257 = vmatpush1.msra.mxu0 %v1237
        %1258 = vmatprep.subr.mxu0 0.0
        %1259 = vmatpush1.msra.mxu0 %v1238
        %1260 = vmatprep.subr.mxu0 0.0
        %1261 = vmatpush1.msra.mxu0 %v1239
        %1262 = vmatprep.subr.mxu0 0.0
        %1263 = vmatpush1.msra.mxu0 %v1240
        %1264 = vmatprep.subr.mxu0 0.0
        %1265 = vmatpush1.msra.mxu0 %v1241
        %1266 = vmatprep.subr.mxu0 0.0
        %1267 = vmatpush1.msra.mxu0 %v1242
        %1268 = vmatprep.subr.mxu0 0.0
        %1269 = vmatpush1.msra.mxu0 %v1243
        %1270 = vmatprep.subr.mxu0 0.0
        %1271 = vmatpush1.msra.mxu0 %v1244
        %1272 = vmatprep.subr.mxu0 0.0
        %1273 = vmatpush1.msra.mxu0 %v1245
        %1274 = vmatprep.subr.mxu0 0.0
        %1275 = vmatpush1.msra.mxu0 %v1246
        %1276 = vmatprep.subr.mxu0 0.0
        %1277 = vmatpush1.msra.mxu0 %v1247
        %1278 = vmatprep.subr.mxu0 0.0
        %1279 = vmatpush1.msra.mxu0 %v1248
        %1280 = vmatprep.subr.mxu0 0.0
        %1281 = vmatpush1.msra.mxu0 %v1249
        %1282 = vmatprep.subr.mxu0 0.0
        %1283 = vmatpush1.msra.mxu0 0.0
        %1284 = vmatprep.subr.mxu0 0.0
        %1285 = vmatpush1.msra.mxu0 0.0
        %1286 = vmatprep.subr.mxu0 0.0
        %1287 = vmatpush1.msra.mxu0 0.0
        %1288 = vmatprep.subr.mxu0 0.0
        %1289 = vmatpush1.msra.mxu0 0.0
        %1290 = vmatprep.subr.mxu0 0.0
        %1291 = vmatpush1.msra.mxu0 0.0
        %1292 = vmatprep.subr.mxu0 0.0
        %1293 = vmatpush1.msra.mxu0 0.0
        %1294 = vmatprep.subr.mxu0 0.0
        %1295 = vmatpush1.msra.mxu0 0.0
        %1296 = vmatprep.subr.mxu0 0.0
        %1297 = vmatpush1.msra.mxu0 0.0
        %1298 = vmatprep.subr.mxu0 0.0
        %1299 = vmatpush1.msra.mxu0 0.0
        %1300 = vmatprep.subr.mxu0 0.0
        %1301 = vmatpush1.msra.mxu0 0.0
        %1302 = vmatprep.subr.mxu0 0.0
        %1303 = vmatpush1.msra.mxu0 0.0
        %1304 = vmatprep.subr.mxu0 0.0
        %1305 = vmatpush1.msra.mxu0 0.0
        %1306 = vmatprep.subr.mxu0 0.0
        %1307 = vmatpush1.msra.mxu0 0.0
        %1308 = vmatprep.subr.mxu0 0.0
        %1309 = vmatpush1.msra.mxu0 0.0
        %1310 = vmatprep.subr.mxu0 0.0
        %1311 = vmatpush1.msra.mxu0 0.0
        %1312 = vmatprep.subr.mxu0 0.0
        %1313 = vmatpush1.msra.mxu0 0.0
        %1314 = vmatprep.mubr.f32.mxu0 0.0
        %1315 = vmatmul.mubr.f32.gmra.mrb[0].mxu0 %v1139
        %v1316 = vpop.f32.mrb[0].mxu0
        %v1317 = vadd.f32 0.0, %v1316
        %v1318 = vpop.f32.mrb[0].mxu0
        %1319 = vmatprep.mubr.f32.mxu0 0.0
        %1320 = vmatmul.mubr.f32.gmra.mrb[0].mxu0 %v1140
        %v1321 = vpop.f32.mrb[0].mxu0
        %v1322 = vadd.f32 0.0, %v1321
        %v1323 = vpop.f32.mrb[0].mxu0
        %1324 = vdwg.mxu0
        %s1325 = scalar_lea.vmem [#allocation7], 1024
        %v1326 = vld [vmem:[%s1325] sm:$0xff]
        %v1327 = vld [vmem:[%s1325 + $0x8] sm:$0xff]
        %v1328 = vld [vmem:[%s1325 + $0x10] sm:$0xff]
        %v1329 = vld [vmem:[%s1325 + $0x18] sm:$0xff]
        %v1330 = vld [vmem:[%s1325 + $0x20] sm:$0xff]
        %v1331 = vld [vmem:[%s1325 + $0x28] sm:$0xff]
        %v1332 = vld [vmem:[%s1325 + $0x30] sm:$0xff]
        %v1333 = vld [vmem:[%s1325 + $0x38] sm:$0xff]
        %v1334 = vld [vmem:[%s1325 + $0x40] sm:$0xff]
        %v1335 = vld [vmem:[%s1325 + $0x48] sm:$0xff]
        %v1336 = vld [vmem:[%s1325 + $0x50] sm:$0xff]
        %v1337 = vld [vmem:[%s1325 + $0x58] sm:$0xff]
        %v1338 = vld [vmem:[%s1325 + $0x60] sm:$0xff]
        %v1339 = vld [vmem:[%s1325 + $0x68] sm:$0xff]
        %v1340 = vld [vmem:[%s1325 + $0x70] sm:$0xff]
        %v1341 = vld [vmem:[%s1325 + $0x78] sm:$0xff]
        %1342 = vmatprep.subr.mxu0 0.0
        %1343 = vmatpush1.msra.mxu0 %v1326
        %1344 = vmatprep.subr.mxu0 0.0
        %1345 = vmatpush1.msra.mxu0 %v1327
        %1346 = vmatprep.subr.mxu0 0.0
        %1347 = vmatpush1.msra.mxu0 %v1328
        %1348 = vmatprep.subr.mxu0 0.0
        %1349 = vmatpush1.msra.mxu0 %v1329
        %1350 = vmatprep.subr.mxu0 0.0
        %1351 = vmatpush1.msra.mxu0 %v1330
        %1352 = vmatprep.subr.mxu0 0.0
        %1353 = vmatpush1.msra.mxu0 %v1331
        %1354 = vmatprep.subr.mxu0 0.0
        %1355 = vmatpush1.msra.mxu0 %v1332
        %1356 = vmatprep.subr.mxu0 0.0
        %1357 = vmatpush1.msra.mxu0 %v1333
        %1358 = vmatprep.subr.mxu0 0.0
        %1359 = vmatpush1.msra.mxu0 %v1334
        %1360 = vmatprep.subr.mxu0 0.0
        %1361 = vmatpush1.msra.mxu0 %v1335
        %1362 = vmatprep.subr.mxu0 0.0
        %1363 = vmatpush1.msra.mxu0 %v1336
        %1364 = vmatprep.subr.mxu0 0.0
        %1365 = vmatpush1.msra.mxu0 %v1337
        %1366 = vmatprep.subr.mxu0 0.0
        %1367 = vmatpush1.msra.mxu0 %v1338
        %1368 = vmatprep.subr.mxu0 0.0
        %1369 = vmatpush1.msra.mxu0 %v1339
        %1370 = vmatprep.subr.mxu0 0.0
        %1371 = vmatpush1.msra.mxu0 %v1340
        %1372 = vmatprep.subr.mxu0 0.0
        %1373 = vmatpush1.msra.mxu0 %v1341
        %1374 = vmatprep.subr.mxu0 0.0
        %1375 = vmatpush1.msra.mxu0 0.0
        %1376 = vmatprep.subr.mxu0 0.0
        %1377 = vmatpush1.msra.mxu0 0.0
        %1378 = vmatprep.subr.mxu0 0.0
        %1379 = vmatpush1.msra.mxu0 0.0
        %1380 = vmatprep.subr.mxu0 0.0
        %1381 = vmatpush1.msra.mxu0 0.0
        %1382 = vmatprep.subr.mxu0 0.0
        %1383 = vmatpush1.msra.mxu0 0.0
        %1384 = vmatprep.subr.mxu0 0.0
        %1385 = vmatpush1.msra.mxu0 0.0
        %1386 = vmatprep.subr.mxu0 0.0
        %1387 = vmatpush1.msra.mxu0 0.0
        %1388 = vmatprep.subr.mxu0 0.0
        %1389 = vmatpush1.msra.mxu0 0.0
        %1390 = vmatprep.subr.mxu0 0.0
        %1391 = vmatpush1.msra.mxu0 0.0
        %1392 = vmatprep.subr.mxu0 0.0
        %1393 = vmatpush1.msra.mxu0 0.0
        %1394 = vmatprep.subr.mxu0 0.0
        %1395 = vmatpush1.msra.mxu0 0.0
        %1396 = vmatprep.subr.mxu0 0.0
        %1397 = vmatpush1.msra.mxu0 0.0
        %1398 = vmatprep.subr.mxu0 0.0
        %1399 = vmatpush1.msra.mxu0 0.0
        %1400 = vmatprep.subr.mxu0 0.0
        %1401 = vmatpush1.msra.mxu0 0.0
        %1402 = vmatprep.subr.mxu0 0.0
        %1403 = vmatpush1.msra.mxu0 0.0
        %1404 = vmatprep.subr.mxu0 0.0
        %1405 = vmatpush1.msra.mxu0 0.0
        %1406 = vmatprep.mubr.f32.mxu0 0.0
        %1407 = vmatmul.mubr.f32.gmra.mrb[0].mxu0 %v1139
        %v1408 = vpop.f32.mrb[0].mxu0
        %v1409 = vadd.f32 0.0, %v1408
        %v1410 = vpop.f32.mrb[0].mxu0
        %1411 = vmatprep.mubr.f32.mxu0 0.0
        %1412 = vmatmul.mubr.f32.gmra.mrb[0].mxu0 %v1140
        %v1413 = vpop.f32.mrb[0].mxu0
        %v1414 = vadd.f32 0.0, %v1413
        %v1415 = vpop.f32.mrb[0].mxu0
        %1416 = vdwg.mxu0
        %1417 = vmatprep.subr.mxu0 0.0
        %1418 = vmatpush1.msra.mxu0 %v1225
        %1419 = vmatprep.subr.mxu0 0.0
        %1420 = vmatpush1.msra.mxu0 %v1230
        %1421 = vmatprep.subr.mxu0 0.0
        %1422 = vmatpush1.msra.mxu0 0.0
        %1423 = vmatprep.subr.mxu0 0.0
        %1424 = vmatpush1.msra.mxu0 0.0
        %1425 = vmatprep.subr.mxu0 0.0
        %1426 = vmatpush1.msra.mxu0 0.0
        %1427 = vmatprep.subr.mxu0 0.0
        %1428 = vmatpush1.msra.mxu0 0.0
        %1429 = vmatprep.subr.mxu0 0.0
        %1430 = vmatpush1.msra.mxu0 0.0
        %1431 = vmatprep.subr.mxu0 0.0
        %1432 = vmatpush1.msra.mxu0 0.0
        %1433 = vmatprep.subr.mxu0 0.0
        %1434 = vmatpush1.msra.mxu0 0.0
        %1435 = vmatprep.subr.mxu0 0.0
        %1436 = vmatpush1.msra.mxu0 0.0
        %1437 = vmatprep.subr.mxu0 0.0
        %1438 = vmatpush1.msra.mxu0 0.0
        %1439 = vmatprep.subr.mxu0 0.0
        %1440 = vmatpush1.msra.mxu0 0.0
        %1441 = vmatprep.subr.mxu0 0.0
        %1442 = vmatpush1.msra.mxu0 0.0
        %1443 = vmatprep.subr.mxu0 0.0
        %1444 = vmatpush1.msra.mxu0 0.0
        %1445 = vmatprep.subr.mxu0 0.0
        %1446 = vmatpush1.msra.mxu0 0.0
        %1447 = vmatprep.subr.mxu0 0.0
        %1448 = vmatpush1.msra.mxu0 0.0
        %1449 = vmatprep.subr.mxu0 0.0
        %1450 = vmatpush1.msra.mxu0 0.0
        %1451 = vmatprep.subr.mxu0 0.0
        %1452 = vmatpush1.msra.mxu0 0.0
        %1453 = vmatprep.subr.mxu0 0.0
        %1454 = vmatpush1.msra.mxu0 0.0
        %1455 = vmatprep.subr.mxu0 0.0
        %1456 = vmatpush1.msra.mxu0 0.0
        %1457 = vmatprep.subr.mxu0 0.0
        %1458 = vmatpush1.msra.mxu0 0.0
        %1459 = vmatprep.subr.mxu0 0.0
        %1460 = vmatpush1.msra.mxu0 0.0
        %1461 = vmatprep.subr.mxu0 0.0
        %1462 = vmatpush1.msra.mxu0 0.0
        %1463 = vmatprep.subr.mxu0 0.0
        %1464 = vmatpush1.msra.mxu0 0.0
        %1465 = vmatprep.subr.mxu0 0.0
        %1466 = vmatpush1.msra.mxu0 0.0
        %1467 = vmatprep.subr.mxu0 0.0
        %1468 = vmatpush1.msra.mxu0 0.0
        %1469 = vmatprep.subr.mxu0 0.0
        %1470 = vmatpush1.msra.mxu0 0.0
        %1471 = vmatprep.subr.mxu0 0.0
        %1472 = vmatpush1.msra.mxu0 0.0
        %1473 = vmatprep.subr.mxu0 0.0
        %1474 = vmatpush1.msra.mxu0 0.0
        %1475 = vmatprep.subr.mxu0 0.0
        %1476 = vmatpush1.msra.mxu0 0.0
        %1477 = vmatprep.subr.mxu0 0.0
        %1478 = vmatpush1.msra.mxu0 0.0
        %1479 = vmatprep.subr.mxu0 0.0
        %1480 = vmatpush1.msra.mxu0 0.0
        %1481 = vmatprep.mubr.f32.mxu0 0.0
        %1482 = vmatmul.mubr.f32.gmra.mrb[0].mxu0 %v529
        %v1483 = vpop.f32.mrb[0].mxu0
        %v1484 = vadd.f32 %v1317, %v1483
        %v1485 = vpop.f32.mrb[0].mxu0
        %1486 = vmatprep.mubr.f32.mxu0 0.0
        %1487 = vmatmul.mubr.f32.gmra.mrb[0].mxu0 %v532
        %v1488 = vpop.f32.mrb[0].mxu0
        %v1489 = vadd.f32 %v1322, %v1488
        %v1490 = vpop.f32.mrb[0].mxu0
        %1491 = vdwg.mxu0
        %1492 = vmatprep.subr.mxu0 0.0
        %1493 = vmatpush1.msra.mxu0 %v1409
        %1494 = vmatprep.subr.mxu0 0.0
        %1495 = vmatpush1.msra.mxu0 %v1414
        %1496 = vmatprep.subr.mxu0 0.0
        %1497 = vmatpush1.msra.mxu0 0.0
        %1498 = vmatprep.subr.mxu0 0.0
        %1499 = vmatpush1.msra.mxu0 0.0
        %1500 = vmatprep.subr.mxu0 0.0
        %1501 = vmatpush1.msra.mxu0 0.0
        %1502 = vmatprep.subr.mxu0 0.0
        %1503 = vmatpush1.msra.mxu0 0.0
        %1504 = vmatprep.subr.mxu0 0.0
        %1505 = vmatpush1.msra.mxu0 0.0
        %1506 = vmatprep.subr.mxu0 0.0
        %1507 = vmatpush1.msra.mxu0 0.0
        %1508 = vmatprep.subr.mxu0 0.0
        %1509 = vmatpush1.msra.mxu0 0.0
        %1510 = vmatprep.subr.mxu0 0.0
        %1511 = vmatpush1.msra.mxu0 0.0
        %1512 = vmatprep.subr.mxu0 0.0
        %1513 = vmatpush1.msra.mxu0 0.0
        %1514 = vmatprep.subr.mxu0 0.0
        %1515 = vmatpush1.msra.mxu0 0.0
        %1516 = vmatprep.subr.mxu0 0.0
        %1517 = vmatpush1.msra.mxu0 0.0
        %1518 = vmatprep.subr.mxu0 0.0
        %1519 = vmatpush1.msra.mxu0 0.0
        %1520 = vmatprep.subr.mxu0 0.0
        %1521 = vmatpush1.msra.mxu0 0.0
        %1522 = vmatprep.subr.mxu0 0.0
        %1523 = vmatpush1.msra.mxu0 0.0
        %1524 = vmatprep.subr.mxu0 0.0
        %1525 = vmatpush1.msra.mxu0 0.0
        %1526 = vmatprep.subr.mxu0 0.0
        %1527 = vmatpush1.msra.mxu0 0.0
        %1528 = vmatprep.subr.mxu0 0.0
        %1529 = vmatpush1.msra.mxu0 0.0
        %1530 = vmatprep.subr.mxu0 0.0
        %1531 = vmatpush1.msra.mxu0 0.0
        %1532 = vmatprep.subr.mxu0 0.0
        %1533 = vmatpush1.msra.mxu0 0.0
        %1534 = vmatprep.subr.mxu0 0.0
        %1535 = vmatpush1.msra.mxu0 0.0
        %1536 = vmatprep.subr.mxu0 0.0
        %1537 = vmatpush1.msra.mxu0 0.0
        %1538 = vmatprep.subr.mxu0 0.0
        %1539 = vmatpush1.msra.mxu0 0.0
        %1540 = vmatprep.subr.mxu0 0.0
        %1541 = vmatpush1.msra.mxu0 0.0
        %1542 = vmatprep.subr.mxu0 0.0
        %1543 = vmatpush1.msra.mxu0 0.0
        %1544 = vmatprep.subr.mxu0 0.0
        %1545 = vmatpush1.msra.mxu0 0.0
        %1546 = vmatprep.subr.mxu0 0.0
        %1547 = vmatpush1.msra.mxu0 0.0
        %1548 = vmatprep.subr.mxu0 0.0
        %1549 = vmatpush1.msra.mxu0 0.0
        %1550 = vmatprep.subr.mxu0 0.0
        %1551 = vmatpush1.msra.mxu0 0.0
        %1552 = vmatprep.subr.mxu0 0.0
        %1553 = vmatpush1.msra.mxu0 0.0
        %1554 = vmatprep.subr.mxu0 0.0
        %1555 = vmatpush1.msra.mxu0 0.0
        %1556 = vmatprep.mubr.f32.mxu0 0.0
        %1557 = vmatmul.mubr.f32.gmra.mrb[0].mxu0 %v610
        %v1558 = vpop.f32.mrb[0].mxu0
        %v1559 = vadd.f32 0.0, %v1558
        %v1560 = vpop.f32.mrb[0].mxu0
        %1561 = vmatprep.mubr.f32.mxu0 0.0
        %1562 = vmatmul.mubr.f32.gmra.mrb[0].mxu0 %v613
        %v1563 = vpop.f32.mrb[0].mxu0
        %v1564 = vadd.f32 0.0, %v1563
        %v1565 = vpop.f32.mrb[0].mxu0
        %1566 = vdwg.mxu0
        %v1567 = vadd.f32 %v1484, %v1559
        %v1568 = vadd.f32 %v1489, %v1564
        %s1569 = scalar_lea.vmem %s3, 2
        %v1570 = vld [vmem:[%s1569] sm:$0x1]
        %v1572 = vlaneseq
        %v1573 = vshrl.u32 %v1572, 7
        %v1574 = vsub.s32 0, %v1573
        %v1575 = vrot.slane %v1570, %v1574
        %v1577 = vadd.f32 %v1567, %v1575
        %v1578 = vadd.f32 %v1568, %v1575
        %v1579 = vadd.f32 %v245, %v1577
        %v1580 = vadd.f32 %v246, %v1578
        %v1581 = vmax.f32 %v1579, 0.0
        %v1582 = vmax.f32 %v1580, 0.0
        %1583 = vst [vmem:[%s244] sm:$0xff] %v1581
        %1584 = vst [vmem:[%s244 + $0x8] sm:$0xff] %v1582
        %s1585 = sand.u32 %s119, 1
        %s1586 = scalar_lea.sflag [#allocation4], %s1585
        %s1587 = sand.u32 %s119, 1
        %s1588 = smul.addr %s1587, 16
        %s1589 = scalar_lea.vmem [#allocation8], %s1588
        // Predicated region
        $region49: #{tpu_custom_call.1} parent=35 // pred_check
          %p1590 = pneg %p129
        $region50: #{tpu_custom_call.1} parent=35 // pred_check_branch
          %1592 = sbr.rel (%p1590) target = $region52
        $region51: #{tpu_custom_call.1} parent=35 // pred_region
          %s1594 = ssub.s32 256, 256
          %1595 = vsyncadd %s1586, %s1594
          %s1596 = smul.addr %s22, 2
          %s1597 = smul.addr %s1596, 128
          %s1598 = scalar_lea.hbm %s4, %s1597
          %s1599 = sshll.u32 %s1589, 4
          %s1600 = int_to_ptr.vmem [resolvable:$true] %s1599
          %1605 = dma.vmem_to_hbm [thread:$0]  %s1600, 256, %s1598, %s1586, 128, 128, 8
        $region52: #{tpu_custom_call.1} parent=35 // pred_fallthru
          _
      $region36: #{tpu_custom_call.1} parent=5 // pred_fallthru
        _
      %p1606 = scmp.le.s32.totalorder 2, %s17
      // Predicated region
      $region53: #{tpu_custom_call.1} parent=5 // pred_check
        %p1607 = pneg %p1606
      $region54: #{tpu_custom_call.1} parent=5 // pred_check_branch
        %1609 = sbr.rel (%p1607) target = $region56
      $region55: #{tpu_custom_call.1} parent=5 // pred_region
        %s1610 = ssub.s32 %s17, 2
        // Predicated region
        $region57: #{tpu_custom_call.1} parent=55 // pred_check
          %p1611 = pneg %p135
        $region58: #{tpu_custom_call.1} parent=55 // pred_check_branch
          %1613 = sbr.rel (%p1611) target = $region60
        $region59: #{tpu_custom_call.1} parent=55 // pred_region
          %s1614 = sand.u32 %s120, 1
          %s1615 = scalar_lea.sflag [#allocation4], %s1614
          %s1616 = sand.u32 %s120, 1
          %s1617 = smul.addr %s1616, 16
          %s1618 = scalar_lea.vmem [#allocation8], %s1617
          %1619 = dma.done %s1615, 256
        $region60: #{tpu_custom_call.1} parent=55 // pred_fallthru
          _
      $region56: #{tpu_custom_call.1} parent=5 // pred_fallthru
        _
    $region6: #{tpu_custom_call.1} parent=1 // loop_footer
      %s21 = sadd.s32 1, %s17
    $region7: #{tpu_custom_call.1} parent=1 // loop_footer_branch
      %16 = sbr.rel target = $region3
    $region8: #{tpu_custom_call.1} parent=1 // loop_exit
      _
    %1620 = vsyncpa [#allocation3], 1
    %s1621 = scalar_lea.sflag [#allocation3], 1
    %1622 = vsyncpa %s1621, 1
    %1623 = vsyncpa [#allocation6], 1
    %1624 = vsyncpa [#allocation4], 1
    %s1625 = scalar_lea.sflag [#allocation4], 1
    %1626 = vsyncpa %s1625, 1

</llo_original>
